<compile_context>
chip_gen: v7x
topology: tpu7x:2x2x1
jax: 0.10.0
libtpu: 0.0.40
codegen_flags: <defaults>
</compile_context>

<pallas_src>
import itertools

import numpy as np

import jax
import jax.numpy as jnp
from jax import lax
from jax.experimental import pallas as pl
from jax.experimental.pallas import tpu as pltpu

BN_EPS = 1e-5  # PyTorch (Sync)BatchNorm default


# ---------------------------------------------------------------------------
# Pallas kernel: full module forward for one group of batch elements
# ---------------------------------------------------------------------------
def spm_kernel(patch_ref,             # (GM1, Kp)  bf16  im2col patches (all branches on K)
               w1_ref, b1_ref,        # (Kp, Cp)   bf16 block-diag conv1*BN1 ; (1, Cp) f32
               g_ref,                 # (9*GM2, GM1) bf16  pool selection, taps stacked on rows
               wcat_ref, b2_ref,      # (Cp, 9*Cp) bf16 hstacked conv2*BN2 taps ; (1, Cp) f32
               p_ref,                 # (9, GM2, GM2) bf16  0/1 spatial shift per tap
               wfc_ref, bfc_ref,      # (Cp, Ep)   bf16 block-diag 1x1 fc ; (1, Ep) f32
               out_ref):              # (GM2, Ep)  f32, lane-dense
    gm2 = out_ref.shape[0]
    cp = b1_ref.shape[1]

    # ---- stem conv (stride 2, BN1 folded) + ReLU: one block-diag GEMM -----
    y1 = jnp.dot(patch_ref[...], w1_ref[...], preferred_element_type=jnp.float32)
    y1 = jnp.maximum(y1 + b1_ref[...], 0.0).astype(jnp.bfloat16)       # (GM1, Cp) >= 0

    # ---- MaxPool2d(3, stride 2, pad 1): ONE selection GEMM + tree max -----
    # OOB taps select the all-zero row, harmless because the pool input is
    # post-ReLU (>= 0) and every window's center tap is in bounds.
    sel = jnp.dot(g_ref[...], y1, preferred_element_type=jnp.float32)   # (9*GM2, Cp)
    slab = [sel[t * gm2:(t + 1) * gm2, :] for t in range(9)]            # aligned row slabs
    pooled = jnp.maximum(
        jnp.maximum(jnp.maximum(slab[0], slab[1]), jnp.maximum(slab[2], slab[3])),
        jnp.maximum(jnp.maximum(slab[4], slab[5]),
                    jnp.maximum(jnp.maximum(slab[6], slab[7]), slab[8])))
    pooled = pooled.astype(jnp.bfloat16)                                 # (GM2, Cp)

    # ---- 3x3 stride-1 conv (BN2 folded) + ReLU ----------------------------
    # One big GEMM over all 9 taps' weights (N = 9*Cp), then tiny 0/1 shift
    # matmuls per tap (lane slices at multiples of Cp=128 are tile-aligned),
    # combined with a pairwise tree add (no serial accumulate chain).
    z = jnp.dot(pooled, wcat_ref[...], preferred_element_type=jnp.float32)  # (GM2, 9*Cp)
    zb = z.astype(jnp.bfloat16)
    taps = [jnp.dot(p_ref[t], zb[:, t * cp:(t + 1) * cp],
                    preferred_element_type=jnp.float32) for t in range(9)]
    acc = (((taps[0] + taps[1]) + (taps[2] + taps[3]))
           + ((taps[4] + taps[5]) + ((taps[6] + taps[7]) + taps[8])))
    y2 = jnp.maximum(acc + b2_ref[...], 0.0).astype(jnp.bfloat16)        # (GM2, Cp)

    # ---- 1x1 fc of all three branches: one block-diag GEMM + bias ---------
    out_ref[...] = (jnp.dot(y2, wfc_ref[...], preferred_element_type=jnp.float32)
                    + bfc_ref[...])                                       # (GM2, Ep) f32


# ---------------------------------------------------------------------------
# pallas_call wrapper
# ---------------------------------------------------------------------------
def spatial_prior_forward(patches_flat, params, *, group_size, m1, m2):
    rows, kp = patches_flat.shape
    gm1 = group_size * m1
    gm2 = group_size * m2
    assert rows % gm1 == 0
    num_groups = rows // gm1
    cp = params["b1"].shape[1]
    ep = params["bfc"].shape[1]

    weight_order = ("W1", "b1", "G", "Wcat", "b2", "P", "Wfc", "bfc")

    def const_spec(a):
        nd = a.ndim
        return pl.BlockSpec(a.shape, lambda g, _nd=nd: (0,) * _nd)

    in_specs = [pl.BlockSpec((gm1, kp), lambda g: (g, 0))]
    in_specs += [const_spec(params[n]) for n in weight_order]

    # Advisory cost estimate (kernel is tiny / latency-bound at these shapes).
    flops = 2 * num_groups * (gm1 * kp * cp            # stem GEMM
                              + 9 * gm2 * gm1 * cp     # pool selection GEMM
                              + gm2 * cp * 9 * cp      # conv2 weight GEMM
                              + 9 * gm2 * gm2 * cp     # conv2 shift matmuls
                              + gm2 * cp * ep)         # fc GEMM
    bytes_accessed = (patches_flat.size * patches_flat.dtype.itemsize
                      + sum(int(params[n].size) * params[n].dtype.itemsize
                            for n in weight_order)
                      + num_groups * gm2 * ep * 4)

    return pl.pallas_call(
        spm_kernel,
        out_shape=jax.ShapeDtypeStruct((num_groups * gm2, ep), jnp.float32),
        grid_spec=pltpu.PrefetchScalarGridSpec(
            num_scalar_prefetch=0,
            grid=(num_groups,),
            in_specs=in_specs,
            out_specs=pl.BlockSpec((gm2, ep), lambda g: (g, 0)),
        ),
        compiler_params=pltpu.CompilerParams(
            dimension_semantics=("parallel",)),
        cost_estimate=pl.CostEstimate(flops=int(flops), transcendentals=0,
                                      bytes_accessed=int(bytes_accessed)),
    )(patches_flat, *[params[n] for n in weight_order])


# ---------------------------------------------------------------------------
# Wrapper-side layout plumbing & constant folding (done once per param set)
# ---------------------------------------------------------------------------
def _round_up(n, m):
    return (n + m - 1) // m * m


def _block_diag(mats):
    rows = sum(m.shape[0] for m in mats)
    cols = sum(m.shape[1] for m in mats)
    out = np.zeros((rows, cols), np.float32)
    r = c = 0
    for m in mats:
        out[r:r + m.shape[0], c:c + m.shape[1]] = np.asarray(m)
        r += m.shape[0]
        c += m.shape[1]
    return out


def _group_block_diag(mat, gs):
    r, c = mat.shape
    out = np.zeros((gs * r, gs * c), mat.dtype)
    for b in range(gs):
        out[b * r:(b + 1) * r, b * c:(b + 1) * c] = mat
    return out


def build_pool_select(h1, w1, h2, w2):
    """0/1 row-selection matrices for MaxPool2d(3, stride=2, padding=1)."""
    g = np.zeros((9, h2 * w2, h1 * w1), np.float32)
    for t, (a, b) in enumerate(itertools.product((-1, 0, 1), repeat=2)):
        for i in range(h2):
            for j in range(w2):
                y, x = 2 * i + a, 2 * j + b
                if 0 <= y < h1 and 0 <= x < w1:
                    g[t, i * w2 + j, y * w1 + x] = 1.0
    return g


def build_shift(h2, w2):
    """0/1 row-shift matrices (zero padding) for a 3x3 stride-1 conv."""
    p = np.zeros((9, h2 * w2, h2 * w2), np.float32)
    for t, (a, b) in enumerate(itertools.product((-1, 0, 1), repeat=2)):
        for i in range(h2):
            for j in range(w2):
                y, x = i + a, j + b
                if 0 <= y < h2 and 0 <= x < w2:
                    p[t, i * w2 + j, y * w2 + x] = 1.0
    return p


def im2col_stride2(x_nhwc, k):
    """im2col for a k x k, stride-2, pad=k//2 conv. Returns (B, Ho*Wo, k*k*Cin)."""
    pad = k // 2
    b, h, w, cin = x_nhwc.shape
    ho = (h + 2 * pad - k) // 2 + 1
    wo = (w + 2 * pad - k) // 2 + 1
    xp = jnp.pad(x_nhwc, ((0, 0), (pad, pad), (pad, pad), (0, 0)))
    taps = [xp[:, dy:dy + 2 * ho:2, dx:dx + 2 * wo:2, :]
            for dy in range(k) for dx in range(k)]
    pat = jnp.stack(taps, axis=3)                       # (B, Ho, Wo, k*k, Cin)
    return pat.reshape(b, ho * wo, k * k * cin)


def prepare_kernel_params(branch_params, H1, W1, H2, W2, group_size):
    """Fold eval-mode BN into conv weights, merge branches block-diagonally,
    lane-pad (K->256, C->128, 3E->128), cast matmul operands to bf16."""
    m1, m2 = H1 * W1, H2 * W2
    w1m, b1s, w2t, b2s, wfcm, bfcs = [], [], [], [], [], []
    for bp in branch_params:
        c, cin, k, _ = bp["W1"].shape
        s1 = np.asarray(bp["g1"]) / np.sqrt(np.asarray(bp["v1"]) + BN_EPS)
        bb1 = np.asarray(bp["be1"]) - np.asarray(bp["m1"]) * s1
        s2 = np.asarray(bp["g2"]) / np.sqrt(np.asarray(bp["v2"]) + BN_EPS)
        bb2 = np.asarray(bp["be2"]) - np.asarray(bp["m2"]) * s2
        w1s = np.asarray(bp["W1"]) * s1[:, None, None, None]
        w1m.append(w1s.transpose(2, 3, 1, 0).reshape(k * k * cin, c))
        b1s.append(bb1)
        w2s = np.asarray(bp["W2"]) * s2[:, None, None, None]
        w2t.append(w2s.transpose(2, 3, 1, 0).reshape(9, c, c))
        b2s.append(bb2)
        wfcm.append(np.asarray(bp["Wfc"])[:, :, 0, 0].T)            # (c, e)
        bfcs.append(np.asarray(bp["bfc"]))

    ktot = sum(m.shape[0] for m in w1m)
    ctot = sum(m.shape[1] for m in w1m)
    e3 = sum(b.shape[0] for b in bfcs)
    kp = _round_up(ktot, 128)
    cp = _round_up(ctot, 128)
    ep = _round_up(e3, 128)

    def pad2(a, r, c):
        out = np.zeros((r, c), np.float32)
        out[:a.shape[0], :a.shape[1]] = a
        return out

    w1_bd = pad2(_block_diag(w1m), kp, cp)
    b1 = np.zeros((1, cp), np.float32)
    b1[0, :ctot] = np.concatenate(b1s)
    wcat = np.concatenate(
        [pad2(_block_diag([taps[t] for taps in w2t]), cp, cp) for t in range(9)],
        axis=1)                                                     # (cp, 9*cp)
    b2 = np.zeros((1, cp), np.float32)
    b2[0, :ctot] = np.concatenate(b2s)
    wfc = pad2(_block_diag(wfcm), cp, ep)
    bfc = np.zeros((1, ep), np.float32)
    bfc[0, :e3] = np.concatenate(bfcs)

    g_single = build_pool_select(H1, W1, H2, W2)                    # (9, m2, m1)
    p_single = build_shift(H2, W2)                                  # (9, m2, m2)
    g_grp = np.concatenate([_group_block_diag(g_single[t], group_size)
                            for t in range(9)], axis=0)             # (9*gs*m2, gs*m1)
    p_grp = np.stack([_group_block_diag(p_single[t], group_size)])[0] if False else \
        np.stack([_group_block_diag(p_single[t], group_size) for t in range(9)])

    bf16 = jnp.bfloat16
    return {
        "W1": jnp.asarray(w1_bd, bf16),
        "b1": jnp.asarray(b1),
        "G": jnp.asarray(g_grp, bf16),      # 0/1 -> exact in bf16
        "Wcat": jnp.asarray(wcat, bf16),
        "b2": jnp.asarray(b2),
        "P": jnp.asarray(p_grp, bf16),      # 0/1 -> exact in bf16
        "Wfc": jnp.asarray(wfc, bf16),
        "bfc": jnp.asarray(bfc),
        "dims": dict(ktot=ktot, ctot=ctot, e3=e3, kp=kp, cp=cp, ep=ep),
    }


# ---------------------------------------------------------------------------
# Pure-JAX reference replicating the PyTorch module (for verification)
# ---------------------------------------------------------------------------
def _bn(y, g, b, m, v):
    s = g / jnp.sqrt(v + BN_EPS)
    return y * s[None, :, None, None] + (b - m * s)[None, :, None, None]


def reference_forward(x, branch_params):
    DN = ("NCHW", "OIHW", "NCHW")
    HI = lax.Precision.HIGHEST
    outs = []
    for bp in branch_params:
        k = bp["W1"].shape[-1]
        pad = k // 2
        y = lax.conv_general_dilated(x, bp["W1"], (2, 2), ((pad, pad), (pad, pad)),
                                     dimension_numbers=DN, precision=HI)
        y = jnp.maximum(_bn(y, bp["g1"], bp["be1"], bp["m1"], bp["v1"]), 0.0)
        y = lax.reduce_window(y, -jnp.inf, lax.max, (1, 1, 3, 3), (1, 1, 2, 2),
                              ((0, 0), (0, 0), (1, 1), (1, 1)))
        y = lax.conv_general_dilated(y, bp["W2"], (1, 1), ((1, 1), (1, 1)),
                                     dimension_numbers=DN, precision=HI)
        y = jnp.maximum(_bn(y, bp["g2"], bp["be2"], bp["m2"], bp["v2"]), 0.0)
        y = lax.conv_general_dilated(y, bp["Wfc"], (1, 1), ((0, 0), (0, 0)),
                                     dimension_numbers=DN, precision=HI)
        y = y + bp["bfc"][None, :, None, None]
        bb, e, h2, w2 = y.shape
        outs.append(y.reshape(bb, e, h2 * w2).transpose(0, 2, 1))
    return outs


def make_branch_params(key, k, c, cin, e):
    ks = jax.random.split(key, 12)
    s_w1 = 0.5 / float(cin * k * k) ** 0.5
    s_w2 = 0.5 / float(c * 9) ** 0.5
    s_fc = 0.5 / float(c) ** 0.5
    return {
        "W1": jax.random.normal(ks[0], (c, cin, k, k), jnp.float32) * s_w1,
        "g1": 1.0 + 0.1 * jax.random.normal(ks[1], (c,), jnp.float32),
        "be1": 0.1 * jax.random.normal(ks[2], (c,), jnp.float32),
        "m1": 0.1 * jax.random.normal(ks[3], (c,), jnp.float32),
        "v1": 0.5 + 0.5 * jnp.abs(jax.random.normal(ks[4], (c,), jnp.float32)),
        "W2": jax.random.normal(ks[5], (c, c, 3, 3), jnp.float32) * s_w2,
        "g2": 1.0 + 0.1 * jax.random.normal(ks[6], (c,), jnp.float32),
        "be2": 0.1 * jax.random.normal(ks[7], (c,), jnp.float32),
        "m2": 0.1 * jax.random.normal(ks[8], (c,), jnp.float32),
        "v2": 0.5 + 0.5 * jnp.abs(jax.random.normal(ks[9], (c,), jnp.float32)),
        "Wfc": jax.random.normal(ks[10], (e, c, 1, 1), jnp.float32) * s_fc,
        "bfc": 0.1 * jax.random.normal(ks[11], (e,), jnp.float32),
    }


if __name__ == "__main__":
    # Small shapes consistent with the module: input (B, 3, 16, 16),
    # inplanes=8, embed_dim=32 -> each branch output is (B, 16, 32).
    B, CIN, H, W = 2, 3, 16, 16
    INPLANES, EMBED = 8, 32
    branch_cfg = [(3, INPLANES), (5, 2 * INPLANES), (7, 4 * INPLANES)]

    key = jax.random.PRNGKey(0)
    kx, kparam = jax.random.split(key)
    x = jax.random.normal(kx, (B, CIN, H, W), jnp.float32)

    bkeys = jax.random.split(kparam, 3)
    branch_params = [make_branch_params(bk, k, c, CIN, EMBED)
                     for bk, (k, c) in zip(bkeys, branch_cfg)]

    # Spatial sizes after the stride-2 stem conv and the 3x3/stride-2 maxpool
    # (same for all branches because pad = k//2 for every odd k).
    H1 = (H - 1) // 2 + 1
    W1 = (W - 1) // 2 + 1
    H2 = (H1 + 2 - 3) // 2 + 1
    W2 = (W1 + 2 - 3) // 2 + 1
    M1, M2 = H1 * W1, H2 * W2

    # Fold enough batch elements into one grid step to reach >= 128 GEMM rows
    # (fills MXU rows on single-TC v5e/v6e); leftover batch stays on a
    # "parallel" grid axis so dual-TC v7x can split it across TensorCores.
    gs = max(1, min(B, -(-128 // M1)))
    while B % gs:
        gs -= 1

    params = prepare_kernel_params(branch_params, H1, W1, H2, W2, gs)
    dims = params["dims"]

    # Wrapper-side layout plumbing: NCHW->NHWC, im2col per branch, concat on
    # K, zero-pad K to a lane-dense multiple of 128, fold batch into rows.
    x_nhwc = jnp.transpose(x, (0, 2, 3, 1))
    patches = jnp.concatenate([im2col_stride2(x_nhwc, k) for k, _ in branch_cfg],
                              axis=-1)                          # (B, M1, Ktot)
    patches = jnp.pad(patches,
                      ((0, 0), (0, 0), (0, dims["kp"] - patches.shape[-1])))
    patches_flat = patches.reshape(B * M1, dims["kp"]).astype(jnp.bfloat16)

    out = spatial_prior_forward(patches_flat, params, group_size=gs, m1=M1, m2=M2)
    out = jax.block_until_ready(out)
    out = out.reshape(B, M2, dims["ep"])

    c_low = out[:, :, 0:EMBED]
    c_mid = out[:, :, EMBED:2 * EMBED]
    c_high = out[:, :, 2 * EMBED:3 * EMBED]

    refs = reference_forward(x, branch_params)
    # Tolerance accounts for bf16 MXU operands vs the f32 HIGHEST-precision
    # XLA-conv reference (accumulation stays f32 inside the kernel).
    for name, got, want in zip(("c_low", "c_mid", "c_high"),
                               (c_low, c_mid, c_high), refs):
        assert got.shape == want.shape == (B, M2, EMBED), (got.shape, want.shape)
        err = float(jnp.max(jnp.abs(got - want)))
        assert jnp.allclose(got, want, atol=2e-2, rtol=2e-2), f"{name} max err {err}"

    print("KERNEL_OK")
</pallas_src>

<mosaic_0001>
module attributes {stable_mosaic.version = 11 : i64} {
  func.func @spm_kernel(%arg0: i32, %arg1: memref<128x256xbf16, #tpu.memory_space<vmem>>, %arg2: memref<256x128xbf16, #tpu.memory_space<vmem>>, %arg3: memref<1x128xf32, #tpu.memory_space<vmem>>, %arg4: memref<288x128xbf16, #tpu.memory_space<vmem>>, %arg5: memref<128x1152xbf16, #tpu.memory_space<vmem>>, %arg6: memref<1x128xf32, #tpu.memory_space<vmem>>, %arg7: memref<9x32x32xbf16, #tpu.memory_space<vmem>>, %arg8: memref<128x128xbf16, #tpu.memory_space<vmem>>, %arg9: memref<1x128xf32, #tpu.memory_space<vmem>>, %arg10: memref<32x128xf32, #tpu.memory_space<vmem>>) attributes {dimension_semantics = [#tpu.dimension_semantics<parallel>], iteration_bounds = array<i64: 1>, scalar_prefetch = 0 : i64, scratch_operands = 0 : i64, tpu.core_type = #tpu.core_type<tc>, window_params = [{transform_indices = @transform_0, window_bounds = array<i64: 128, 256>}, {pipeline_mode = #tpu.pipeline_mode<synchronous>, transform_indices = @transform_1, window_bounds = array<i64: 256, 128>}, {pipeline_mode = #tpu.pipeline_mode<synchronous>, transform_indices = @transform_2, window_bounds = array<i64: 1, 128>}, {pipeline_mode = #tpu.pipeline_mode<synchronous>, transform_indices = @transform_3, window_bounds = array<i64: 288, 128>}, {pipeline_mode = #tpu.pipeline_mode<synchronous>, transform_indices = @transform_4, window_bounds = array<i64: 128, 1152>}, {pipeline_mode = #tpu.pipeline_mode<synchronous>, transform_indices = @transform_5, window_bounds = array<i64: 1, 128>}, {pipeline_mode = #tpu.pipeline_mode<synchronous>, transform_indices = @transform_6, window_bounds = array<i64: 9, 32, 32>}, {pipeline_mode = #tpu.pipeline_mode<synchronous>, transform_indices = @transform_7, window_bounds = array<i64: 128, 128>}, {pipeline_mode = #tpu.pipeline_mode<synchronous>, transform_indices = @transform_8, window_bounds = array<i64: 1, 128>}, {transform_indices = @transform_9, window_bounds = array<i64: 32, 128>}]} {
    %c0 = arith.constant 0 : index
    %c0_0 = arith.constant 0 : index
    %0 = vector.load %arg1[%c0, %c0_0] : memref<128x256xbf16, #tpu.memory_space<vmem>>, vector<128x256xbf16>
    %c0_1 = arith.constant 0 : index
    %c0_2 = arith.constant 0 : index
    %1 = vector.load %arg2[%c0_1, %c0_2] : memref<256x128xbf16, #tpu.memory_space<vmem>>, vector<256x128xbf16>
    %cst = arith.constant dense<0.000000e+00> : vector<128x128xf32>
    %2 = tpu.matmul %0, %1, %cst {dimension_numbers = #tpu.dot_dimension_numbers<[1], [0], [0], [1], [0, 0, 1, 1], [], []>} : vector<128x256xbf16>, vector<256x128xbf16>, vector<128x128xf32> -> vector<128x128xf32>
    %c0_3 = arith.constant 0 : index
    %c0_4 = arith.constant 0 : index
    %3 = vector.load %arg3[%c0_3, %c0_4] : memref<1x128xf32, #tpu.memory_space<vmem>>, vector<1x128xf32>
    %4 = vector.broadcast %3 : vector<1x128xf32> to vector<128x128xf32>
    %5 = arith.addf %2, %4 : vector<128x128xf32>
    %cst_5 = arith.constant 0.000000e+00 : f32
    %6 = vector.broadcast %cst_5 : f32 to vector<128x128xf32>
    %7 = arith.maximumf %5, %6 : vector<128x128xf32>
    %8 = arith.truncf %7 : vector<128x128xf32> to vector<128x128xbf16>
    %c0_6 = arith.constant 0 : index
    %c0_7 = arith.constant 0 : index
    %9 = vector.load %arg4[%c0_6, %c0_7] : memref<288x128xbf16, #tpu.memory_space<vmem>>, vector<288x128xbf16>
    %cst_8 = arith.constant dense<0.000000e+00> : vector<288x128xf32>
    %10 = tpu.matmul %9, %8, %cst_8 {dimension_numbers = #tpu.dot_dimension_numbers<[1], [0], [0], [1], [0, 0, 1, 1], [], []>} : vector<288x128xbf16>, vector<128x128xbf16>, vector<288x128xf32> -> vector<288x128xf32>
    %11 = vector.extract_strided_slice %10 {offsets = [0, 0], sizes = [32, 128], strides = [1, 1]} : vector<288x128xf32> to vector<32x128xf32>
    %12 = vector.extract_strided_slice %10 {offsets = [32, 0], sizes = [32, 128], strides = [1, 1]} : vector<288x128xf32> to vector<32x128xf32>
    %13 = vector.extract_strided_slice %10 {offsets = [64, 0], sizes = [32, 128], strides = [1, 1]} : vector<288x128xf32> to vector<32x128xf32>
    %14 = vector.extract_strided_slice %10 {offsets = [96, 0], sizes = [32, 128], strides = [1, 1]} : vector<288x128xf32> to vector<32x128xf32>
    %15 = vector.extract_strided_slice %10 {offsets = [128, 0], sizes = [32, 128], strides = [1, 1]} : vector<288x128xf32> to vector<32x128xf32>
    %16 = vector.extract_strided_slice %10 {offsets = [160, 0], sizes = [32, 128], strides = [1, 1]} : vector<288x128xf32> to vector<32x128xf32>
    %17 = vector.extract_strided_slice %10 {offsets = [192, 0], sizes = [32, 128], strides = [1, 1]} : vector<288x128xf32> to vector<32x128xf32>
    %18 = vector.extract_strided_slice %10 {offsets = [224, 0], sizes = [32, 128], strides = [1, 1]} : vector<288x128xf32> to vector<32x128xf32>
    %19 = vector.extract_strided_slice %10 {offsets = [256, 0], sizes = [32, 128], strides = [1, 1]} : vector<288x128xf32> to vector<32x128xf32>
    %20 = arith.maximumf %11, %12 : vector<32x128xf32>
    %21 = arith.maximumf %13, %14 : vector<32x128xf32>
    %22 = arith.maximumf %20, %21 : vector<32x128xf32>
    %23 = arith.maximumf %15, %16 : vector<32x128xf32>
    %24 = arith.maximumf %17, %18 : vector<32x128xf32>
    %25 = arith.maximumf %24, %19 : vector<32x128xf32>
    %26 = arith.maximumf %23, %25 : vector<32x128xf32>
    %27 = arith.maximumf %22, %26 : vector<32x128xf32>
    %28 = arith.truncf %27 : vector<32x128xf32> to vector<32x128xbf16>
    %c0_9 = arith.constant 0 : index
    %c0_10 = arith.constant 0 : index
    %29 = vector.load %arg5[%c0_9, %c0_10] : memref<128x1152xbf16, #tpu.memory_space<vmem>>, vector<128x1152xbf16>
    %cst_11 = arith.constant dense<0.000000e+00> : vector<32x1152xf32>
    %30 = tpu.matmul %28, %29, %cst_11 {dimension_numbers = #tpu.dot_dimension_numbers<[1], [0], [0], [1], [0, 0, 1, 1], [], []>} : vector<32x128xbf16>, vector<128x1152xbf16>, vector<32x1152xf32> -> vector<32x1152xf32>
    %31 = arith.truncf %30 : vector<32x1152xf32> to vector<32x1152xbf16>
    %c0_12 = arith.constant 0 : index
    %c0_13 = arith.constant 0 : index
    %c0_14 = arith.constant 0 : index
    %32 = vector.load %arg7[%c0_12, %c0_13, %c0_14] : memref<9x32x32xbf16, #tpu.memory_space<vmem>>, vector<1x32x32xbf16>
    %33 = vector.shape_cast %32 : vector<1x32x32xbf16> to vector<32x32xbf16>
    %34 = vector.extract_strided_slice %31 {offsets = [0, 0], sizes = [32, 128], strides = [1, 1]} : vector<32x1152xbf16> to vector<32x128xbf16>
    %cst_15 = arith.constant dense<0.000000e+00> : vector<32x128xf32>
    %35 = tpu.matmul %33, %34, %cst_15 {dimension_numbers = #tpu.dot_dimension_numbers<[1], [0], [0], [1], [0, 0, 1, 1], [], []>} : vector<32x32xbf16>, vector<32x128xbf16>, vector<32x128xf32> -> vector<32x128xf32>
    %c1 = arith.constant 1 : index
    %c0_16 = arith.constant 0 : index
    %c0_17 = arith.constant 0 : index
    %36 = vector.load %arg7[%c1, %c0_16, %c0_17] : memref<9x32x32xbf16, #tpu.memory_space<vmem>>, vector<1x32x32xbf16>
    %37 = vector.shape_cast %36 : vector<1x32x32xbf16> to vector<32x32xbf16>
    %38 = vector.extract_strided_slice %31 {offsets = [0, 128], sizes = [32, 128], strides = [1, 1]} : vector<32x1152xbf16> to vector<32x128xbf16>
    %cst_18 = arith.constant dense<0.000000e+00> : vector<32x128xf32>
    %39 = tpu.matmul %37, %38, %cst_18 {dimension_numbers = #tpu.dot_dimension_numbers<[1], [0], [0], [1], [0, 0, 1, 1], [], []>} : vector<32x32xbf16>, vector<32x128xbf16>, vector<32x128xf32> -> vector<32x128xf32>
    %c2 = arith.constant 2 : index
    %c0_19 = arith.constant 0 : index
    %c0_20 = arith.constant 0 : index
    %40 = vector.load %arg7[%c2, %c0_19, %c0_20] : memref<9x32x32xbf16, #tpu.memory_space<vmem>>, vector<1x32x32xbf16>
    %41 = vector.shape_cast %40 : vector<1x32x32xbf16> to vector<32x32xbf16>
    %42 = vector.extract_strided_slice %31 {offsets = [0, 256], sizes = [32, 128], strides = [1, 1]} : vector<32x1152xbf16> to vector<32x128xbf16>
    %cst_21 = arith.constant dense<0.000000e+00> : vector<32x128xf32>
    %43 = tpu.matmul %41, %42, %cst_21 {dimension_numbers = #tpu.dot_dimension_numbers<[1], [0], [0], [1], [0, 0, 1, 1], [], []>} : vector<32x32xbf16>, vector<32x128xbf16>, vector<32x128xf32> -> vector<32x128xf32>
    %c3 = arith.constant 3 : index
    %c0_22 = arith.constant 0 : index
    %c0_23 = arith.constant 0 : index
    %44 = vector.load %arg7[%c3, %c0_22, %c0_23] : memref<9x32x32xbf16, #tpu.memory_space<vmem>>, vector<1x32x32xbf16>
    %45 = vector.shape_cast %44 : vector<1x32x32xbf16> to vector<32x32xbf16>
    %46 = vector.extract_strided_slice %31 {offsets = [0, 384], sizes = [32, 128], strides = [1, 1]} : vector<32x1152xbf16> to vector<32x128xbf16>
    %cst_24 = arith.constant dense<0.000000e+00> : vector<32x128xf32>
    %47 = tpu.matmul %45, %46, %cst_24 {dimension_numbers = #tpu.dot_dimension_numbers<[1], [0], [0], [1], [0, 0, 1, 1], [], []>} : vector<32x32xbf16>, vector<32x128xbf16>, vector<32x128xf32> -> vector<32x128xf32>
    %c4 = arith.constant 4 : index
    %c0_25 = arith.constant 0 : index
    %c0_26 = arith.constant 0 : index
    %48 = vector.load %arg7[%c4, %c0_25, %c0_26] : memref<9x32x32xbf16, #tpu.memory_space<vmem>>, vector<1x32x32xbf16>
    %49 = vector.shape_cast %48 : vector<1x32x32xbf16> to vector<32x32xbf16>
    %50 = vector.extract_strided_slice %31 {offsets = [0, 512], sizes = [32, 128], strides = [1, 1]} : vector<32x1152xbf16> to vector<32x128xbf16>
    %cst_27 = arith.constant dense<0.000000e+00> : vector<32x128xf32>
    %51 = tpu.matmul %49, %50, %cst_27 {dimension_numbers = #tpu.dot_dimension_numbers<[1], [0], [0], [1], [0, 0, 1, 1], [], []>} : vector<32x32xbf16>, vector<32x128xbf16>, vector<32x128xf32> -> vector<32x128xf32>
    %c5 = arith.constant 5 : index
    %c0_28 = arith.constant 0 : index
    %c0_29 = arith.constant 0 : index
    %52 = vector.load %arg7[%c5, %c0_28, %c0_29] : memref<9x32x32xbf16, #tpu.memory_space<vmem>>, vector<1x32x32xbf16>
    %53 = vector.shape_cast %52 : vector<1x32x32xbf16> to vector<32x32xbf16>
    %54 = vector.extract_strided_slice %31 {offsets = [0, 640], sizes = [32, 128], strides = [1, 1]} : vector<32x1152xbf16> to vector<32x128xbf16>
    %cst_30 = arith.constant dense<0.000000e+00> : vector<32x128xf32>
    %55 = tpu.matmul %53, %54, %cst_30 {dimension_numbers = #tpu.dot_dimension_numbers<[1], [0], [0], [1], [0, 0, 1, 1], [], []>} : vector<32x32xbf16>, vector<32x128xbf16>, vector<32x128xf32> -> vector<32x128xf32>
    %c6 = arith.constant 6 : index
    %c0_31 = arith.constant 0 : index
    %c0_32 = arith.constant 0 : index
    %56 = vector.load %arg7[%c6, %c0_31, %c0_32] : memref<9x32x32xbf16, #tpu.memory_space<vmem>>, vector<1x32x32xbf16>
    %57 = vector.shape_cast %56 : vector<1x32x32xbf16> to vector<32x32xbf16>
    %58 = vector.extract_strided_slice %31 {offsets = [0, 768], sizes = [32, 128], strides = [1, 1]} : vector<32x1152xbf16> to vector<32x128xbf16>
    %cst_33 = arith.constant dense<0.000000e+00> : vector<32x128xf32>
    %59 = tpu.matmul %57, %58, %cst_33 {dimension_numbers = #tpu.dot_dimension_numbers<[1], [0], [0], [1], [0, 0, 1, 1], [], []>} : vector<32x32xbf16>, vector<32x128xbf16>, vector<32x128xf32> -> vector<32x128xf32>
    %c7 = arith.constant 7 : index
    %c0_34 = arith.constant 0 : index
    %c0_35 = arith.constant 0 : index
    %60 = vector.load %arg7[%c7, %c0_34, %c0_35] : memref<9x32x32xbf16, #tpu.memory_space<vmem>>, vector<1x32x32xbf16>
    %61 = vector.shape_cast %60 : vector<1x32x32xbf16> to vector<32x32xbf16>
    %62 = vector.extract_strided_slice %31 {offsets = [0, 896], sizes = [32, 128], strides = [1, 1]} : vector<32x1152xbf16> to vector<32x128xbf16>
    %cst_36 = arith.constant dense<0.000000e+00> : vector<32x128xf32>
    %63 = tpu.matmul %61, %62, %cst_36 {dimension_numbers = #tpu.dot_dimension_numbers<[1], [0], [0], [1], [0, 0, 1, 1], [], []>} : vector<32x32xbf16>, vector<32x128xbf16>, vector<32x128xf32> -> vector<32x128xf32>
    %c8 = arith.constant 8 : index
    %c0_37 = arith.constant 0 : index
    %c0_38 = arith.constant 0 : index
    %64 = vector.load %arg7[%c8, %c0_37, %c0_38] : memref<9x32x32xbf16, #tpu.memory_space<vmem>>, vector<1x32x32xbf16>
    %65 = vector.shape_cast %64 : vector<1x32x32xbf16> to vector<32x32xbf16>
    %66 = vector.extract_strided_slice %31 {offsets = [0, 1024], sizes = [32, 128], strides = [1, 1]} : vector<32x1152xbf16> to vector<32x128xbf16>
    %cst_39 = arith.constant dense<0.000000e+00> : vector<32x128xf32>
    %67 = tpu.matmul %65, %66, %cst_39 {dimension_numbers = #tpu.dot_dimension_numbers<[1], [0], [0], [1], [0, 0, 1, 1], [], []>} : vector<32x32xbf16>, vector<32x128xbf16>, vector<32x128xf32> -> vector<32x128xf32>
    %68 = arith.addf %35, %39 : vector<32x128xf32>
    %69 = arith.addf %43, %47 : vector<32x128xf32>
    %70 = arith.addf %68, %69 : vector<32x128xf32>
    %71 = arith.addf %51, %55 : vector<32x128xf32>
    %72 = arith.addf %59, %63 : vector<32x128xf32>
    %73 = arith.addf %72, %67 : vector<32x128xf32>
    %74 = arith.addf %71, %73 : vector<32x128xf32>
    %75 = arith.addf %70, %74 : vector<32x128xf32>
    %c0_40 = arith.constant 0 : index
    %c0_41 = arith.constant 0 : index
    %76 = vector.load %arg6[%c0_40, %c0_41] : memref<1x128xf32, #tpu.memory_space<vmem>>, vector<1x128xf32>
    %77 = vector.broadcast %76 : vector<1x128xf32> to vector<32x128xf32>
    %78 = arith.addf %75, %77 : vector<32x128xf32>
    %cst_42 = arith.constant 0.000000e+00 : f32
    %79 = vector.broadcast %cst_42 : f32 to vector<32x128xf32>
    %80 = arith.maximumf %78, %79 : vector<32x128xf32>
    %81 = arith.truncf %80 : vector<32x128xf32> to vector<32x128xbf16>
    %c0_43 = arith.constant 0 : index
    %c0_44 = arith.constant 0 : index
    %82 = vector.load %arg8[%c0_43, %c0_44] : memref<128x128xbf16, #tpu.memory_space<vmem>>, vector<128x128xbf16>
    %cst_45 = arith.constant dense<0.000000e+00> : vector<32x128xf32>
    %83 = tpu.matmul %81, %82, %cst_45 {dimension_numbers = #tpu.dot_dimension_numbers<[1], [0], [0], [1], [0, 0, 1, 1], [], []>} : vector<32x128xbf16>, vector<128x128xbf16>, vector<32x128xf32> -> vector<32x128xf32>
    %c0_46 = arith.constant 0 : index
    %c0_47 = arith.constant 0 : index
    %84 = vector.load %arg9[%c0_46, %c0_47] : memref<1x128xf32, #tpu.memory_space<vmem>>, vector<1x128xf32>
    %85 = vector.broadcast %84 : vector<1x128xf32> to vector<32x128xf32>
    %86 = arith.addf %83, %85 : vector<32x128xf32>
    %c0_48 = arith.constant 0 : index
    %c0_49 = arith.constant 0 : index
    %87 = vector.load %arg10[%c0_48, %c0_49] : memref<32x128xf32, #tpu.memory_space<vmem>>, vector<32x128xf32>
    tpu.vector_store %arg10[%c0_48, %c0_49], %86 {strides = array<i32>} : memref<32x128xf32, #tpu.memory_space<vmem>>, vector<32x128xf32>,
    return
  }
  func.func @transform_0(%arg0: i32) -> (i32, i32) {
    %c0_i32 = arith.constant 0 : i32
    %c0_i32_0 = arith.constant 0 : i32
    return %arg0, %c0_i32 : i32, i32
  }
  func.func @transform_1(%arg0: i32) -> (i32, i32) {
    %c0_i32 = arith.constant 0 : i32
    %c0_i32_0 = arith.constant 0 : i32
    %c0_i32_1 = arith.constant 0 : i32
    return %c0_i32, %c0_i32_0 : i32, i32
  }
  func.func @transform_2(%arg0: i32) -> (i32, i32) {
    %c0_i32 = arith.constant 0 : i32
    %c0_i32_0 = arith.constant 0 : i32
    %c0_i32_1 = arith.constant 0 : i32
    return %c0_i32, %c0_i32_0 : i32, i32
  }
  func.func @transform_3(%arg0: i32) -> (i32, i32) {
    %c0_i32 = arith.constant 0 : i32
    %c0_i32_0 = arith.constant 0 : i32
    %c0_i32_1 = arith.constant 0 : i32
    return %c0_i32, %c0_i32_0 : i32, i32
  }
  func.func @transform_4(%arg0: i32) -> (i32, i32) {
    %c0_i32 = arith.constant 0 : i32
    %c0_i32_0 = arith.constant 0 : i32
    %c0_i32_1 = arith.constant 0 : i32
    return %c0_i32, %c0_i32_0 : i32, i32
  }
  func.func @transform_5(%arg0: i32) -> (i32, i32) {
    %c0_i32 = arith.constant 0 : i32
    %c0_i32_0 = arith.constant 0 : i32
    %c0_i32_1 = arith.constant 0 : i32
    return %c0_i32, %c0_i32_0 : i32, i32
  }
  func.func @transform_6(%arg0: i32) -> (i32, i32, i32) {
    %c0_i32 = arith.constant 0 : i32
    %c0_i32_0 = arith.constant 0 : i32
    %c0_i32_1 = arith.constant 0 : i32
    %c0_i32_2 = arith.constant 0 : i32
    return %c0_i32, %c0_i32_0, %c0_i32_1 : i32, i32, i32
  }
  func.func @transform_7(%arg0: i32) -> (i32, i32) {
    %c0_i32 = arith.constant 0 : i32
    %c0_i32_0 = arith.constant 0 : i32
    %c0_i32_1 = arith.constant 0 : i32
    return %c0_i32, %c0_i32_0 : i32, i32
  }
  func.func @transform_8(%arg0: i32) -> (i32, i32) {
    %c0_i32 = arith.constant 0 : i32
    %c0_i32_0 = arith.constant 0 : i32
    %c0_i32_1 = arith.constant 0 : i32
    return %c0_i32, %c0_i32_0 : i32, i32
  }
  func.func @transform_9(%arg0: i32) -> (i32, i32) {
    %c0_i32 = arith.constant 0 : i32
    %c0_i32_0 = arith.constant 0 : i32
    return %arg0, %c0_i32 : i32, i32
  }
}

</mosaic_0001>

<llo_original>
// kernel: tpu_custom_call.1
$region0: #{tpu_custom_call.1}
  #allocation0 [shape = 'u32[]', space=smem, size = 0x4, offset = 0x4, fixed_abs, tag = 'smem constant byte address 0x4 - core index']
  #allocation1 [shape = 'u32[144,128]{1,0:T(1,128)}', space=vmem, size = 0x12000, scoped, tag = 'internal scratch']
  %s0 = inlined_call_operand.hbm [shape: bf16[128,256], index: 0, kind: input, shape index: {}]
  %s1 = inlined_call_operand.hbm [shape: bf16[256,128], index: 1, kind: input, shape index: {}]
  %s2 = inlined_call_operand.vmem [shape: f32[1,128], index: 2, kind: input, shape index: {}]
  %s3 = inlined_call_operand.hbm [shape: bf16[288,128], index: 3, kind: input, shape index: {}]
  %s4 = inlined_call_operand.hbm [shape: bf16[128,1152], index: 4, kind: input, shape index: {}]
  %s5 = inlined_call_operand.vmem [shape: f32[1,128], index: 5, kind: input, shape index: {}]
  %s6 = inlined_call_operand.hbm [shape: bf16[9,32,32], index: 6, kind: input, shape index: {}]
  %s7 = inlined_call_operand.hbm [shape: bf16[128,128], index: 7, kind: input, shape index: {}]
  %s8 = inlined_call_operand.vmem [shape: f32[1,128], index: 8, kind: input, shape index: {}]
  %s9 = inlined_call_operand.hbm [shape: f32[32,128], index: 9, kind: output, shape index: {}]
  %s10 = sld [smem:[#allocation0]]
  $region70: #{tpu_custom_call.1} parent=0
    _
  %s12 = ssub.s32 1, %s10
  %s13 = scalar_select 0, %s12, %s10
  $region1: #{tpu_custom_call.1} parent=0
    #allocation2 [shape = 'u8[65536]{0}', space=vmem, size = 0x10000, scoped, tag = 'input window, operand 0, single buffered']
    #allocation3 [shape = 's32[1]{0}', space=sflag, size = 0x4, scoped, tag = 'scoped memory for tpu_custom_call.1']
    #allocation4 [shape = 's32[1]{0}', space=sflag, size = 0x4, scoped, tag = 'scoped memory for tpu_custom_call.1']
    #allocation5 [shape = 'u8[65536]{0}', space=vmem, size = 0x10000, scoped, tag = 'input window, operand 1, single buffered']
    #allocation6 [shape = 's32[1]{0}', space=sflag, size = 0x4, scoped, tag = 'scoped memory for tpu_custom_call.1']
    #allocation7 [shape = 'u8[73728]{0}', space=vmem, size = 0x12000, scoped, tag = 'input window, operand 3, single buffered']
    #allocation8 [shape = 'u8[294912]{0}', space=vmem, size = 0x48000, scoped, tag = 'input window, operand 4, single buffered']
    #allocation9 [shape = 's32[1]{0}', space=sflag, size = 0x4, scoped, tag = 'scoped memory for tpu_custom_call.1']
    #allocation10 [shape = 'u8[73728]{0}', space=vmem, size = 0x12000, scoped, tag = 'input window, operand 6, single buffered']
    #allocation11 [shape = 'u8[32768]{0}', space=vmem, size = 0x8000, scoped, tag = 'input window, operand 7, single buffered']
    #allocation12 [shape = 's32[1]{0}', space=sflag, size = 0x4, scoped, tag = 'scoped memory for tpu_custom_call.1']
    #allocation13 [shape = 'u8[16384]{0}', space=vmem, size = 0x4000, scoped, tag = 'output window, operand 0, single buffered']
    %14 = vsyncpa [#allocation3], 0
    %15 = vsyncpa [#allocation6], 0
    %16 = vsyncpa [#allocation9], 0
    %17 = vsyncpa [#allocation12], 0
    %18 = vsyncpa [#allocation4], 0
    // Predicated region
    $region2: #{tpu_custom_call.1} parent=1 // pred_check
      _
    $region3: #{tpu_custom_call.1} parent=1 // pred_check_branch
      %20 = sbr.rel (0) target = $region5
    $region4: #{tpu_custom_call.1} parent=1 // pred_region
      %s22 = ssub.s32 2048, 2048
      %23 = vsyncadd [#allocation3], %s22
      %s24 = sshll.u32 [#allocation2], 4
      %s25 = int_to_ptr.vmem [resolvable:$true] %s24
      %30 = dma.hbm_to_vmem [thread:$0]  %s0, 2048, %s25, [#allocation3], 128, 128, 8
    $region5: #{tpu_custom_call.1} parent=1 // pred_fallthru
      _
    // Predicated region
    $region6: #{tpu_custom_call.1} parent=1 // pred_check
      _
    $region7: #{tpu_custom_call.1} parent=1 // pred_check_branch
      %32 = sbr.rel (0) target = $region9
    $region8: #{tpu_custom_call.1} parent=1 // pred_region
      %s34 = ssub.s32 2048, 2048
      %35 = vsyncadd [#allocation6], %s34
      %s36 = sshll.u32 [#allocation5], 4
      %s37 = int_to_ptr.vmem [resolvable:$true] %s36
      %42 = dma.hbm_to_vmem [thread:$0]  %s1, 2048, %s37, [#allocation6], 64, 64, 4
    $region9: #{tpu_custom_call.1} parent=1 // pred_fallthru
      _
    // Predicated region
    $region10: #{tpu_custom_call.1} parent=1 // pred_check
      _
    $region11: #{tpu_custom_call.1} parent=1 // pred_check_branch
      %44 = sbr.rel (0) target = $region13
    $region12: #{tpu_custom_call.1} parent=1 // pred_region
      _
    $region13: #{tpu_custom_call.1} parent=1 // pred_fallthru
      _
    // Predicated region
    $region14: #{tpu_custom_call.1} parent=1 // pred_check
      _
    $region15: #{tpu_custom_call.1} parent=1 // pred_check_branch
      %46 = sbr.rel (0) target = $region17
    $region16: #{tpu_custom_call.1} parent=1 // pred_region
      %s48 = ssub.s32 2304, 2304
      %49 = vsyncadd [#allocation6], %s48
      %s50 = sshll.u32 [#allocation7], 4
      %s51 = int_to_ptr.vmem [resolvable:$true] %s50
      %56 = dma.hbm_to_vmem [thread:$0]  %s3, 2304, %s51, [#allocation6], 64, 64, 4
    $region17: #{tpu_custom_call.1} parent=1 // pred_fallthru
      _
    // Predicated region
    $region18: #{tpu_custom_call.1} parent=1 // pred_check
      _
    $region19: #{tpu_custom_call.1} parent=1 // pred_check_branch
      %58 = sbr.rel (0) target = $region21
    $region20: #{tpu_custom_call.1} parent=1 // pred_region
      %s60 = ssub.s32 9216, 9216
      %61 = vsyncadd [#allocation9], %s60
      %s62 = sshll.u32 [#allocation8], 4
      %s63 = int_to_ptr.vmem [resolvable:$true] %s62
      %68 = dma.hbm_to_vmem [thread:$0]  %s4, 9216, %s63, [#allocation9], 576, 576, 36
    $region21: #{tpu_custom_call.1} parent=1 // pred_fallthru
      _
    // Predicated region
    $region22: #{tpu_custom_call.1} parent=1 // pred_check
      _
    $region23: #{tpu_custom_call.1} parent=1 // pred_check_branch
      %70 = sbr.rel (0) target = $region25
    $region24: #{tpu_custom_call.1} parent=1 // pred_region
      _
    $region25: #{tpu_custom_call.1} parent=1 // pred_fallthru
      _
    // Predicated region
    $region26: #{tpu_custom_call.1} parent=1 // pred_check
      _
    $region27: #{tpu_custom_call.1} parent=1 // pred_check_branch
      %72 = sbr.rel (0) target = $region29
    $region28: #{tpu_custom_call.1} parent=1 // pred_region
      %s74 = ssub.s32 2304, 2304
      %75 = vsyncadd [#allocation9], %s74
      %s76 = sshll.u32 [#allocation10], 4
      %s77 = int_to_ptr.vmem [resolvable:$true] %s76
      %82 = dma.hbm_to_vmem [thread:$0]  %s6, 2304, %s77, [#allocation9], 64, 64, 4
    $region29: #{tpu_custom_call.1} parent=1 // pred_fallthru
      _
    // Predicated region
    $region30: #{tpu_custom_call.1} parent=1 // pred_check
      _
    $region31: #{tpu_custom_call.1} parent=1 // pred_check_branch
      %84 = sbr.rel (0) target = $region33
    $region32: #{tpu_custom_call.1} parent=1 // pred_region
      %s86 = ssub.s32 1024, 1024
      %87 = vsyncadd [#allocation12], %s86
      %s88 = sshll.u32 [#allocation11], 4
      %s89 = int_to_ptr.vmem [resolvable:$true] %s88
      %94 = dma.hbm_to_vmem [thread:$0]  %s7, 1024, %s89, [#allocation12], 64, 64, 4
    $region33: #{tpu_custom_call.1} parent=1 // pred_fallthru
      _
    // Predicated region
    $region34: #{tpu_custom_call.1} parent=1 // pred_check
      _
    $region35: #{tpu_custom_call.1} parent=1 // pred_check_branch
      %96 = sbr.rel (0) target = $region37
    $region36: #{tpu_custom_call.1} parent=1 // pred_region
      _
    $region37: #{tpu_custom_call.1} parent=1 // pred_fallthru
      _
    // Predicated region
    $region38: #{tpu_custom_call.1} parent=1 // pred_check
      _
    $region39: #{tpu_custom_call.1} parent=1 // pred_check_branch
      %98 = sbr.rel (0) target = $region41
    $region40: #{tpu_custom_call.1} parent=1 // pred_region
      %99 = dma.done [#allocation3], 2048
    $region41: #{tpu_custom_call.1} parent=1 // pred_fallthru
      _
    // Predicated region
    $region42: #{tpu_custom_call.1} parent=1 // pred_check
      _
    $region43: #{tpu_custom_call.1} parent=1 // pred_check_branch
      %101 = sbr.rel (0) target = $region45
    $region44: #{tpu_custom_call.1} parent=1 // pred_region
      %102 = dma.done [#allocation6], 2048
    $region45: #{tpu_custom_call.1} parent=1 // pred_fallthru
      _
    // Predicated region
    $region46: #{tpu_custom_call.1} parent=1 // pred_check
      _
    $region47: #{tpu_custom_call.1} parent=1 // pred_check_branch
      %104 = sbr.rel (0) target = $region49
    $region48: #{tpu_custom_call.1} parent=1 // pred_region
      %105 = dma.done [#allocation6], 2304
    $region49: #{tpu_custom_call.1} parent=1 // pred_fallthru
      _
    // Predicated region
    $region50: #{tpu_custom_call.1} parent=1 // pred_check
      _
    $region51: #{tpu_custom_call.1} parent=1 // pred_check_branch
      %107 = sbr.rel (0) target = $region53
    $region52: #{tpu_custom_call.1} parent=1 // pred_region
      %108 = dma.done [#allocation9], 9216
    $region53: #{tpu_custom_call.1} parent=1 // pred_fallthru
      _
    // Predicated region
    $region54: #{tpu_custom_call.1} parent=1 // pred_check
      _
    $region55: #{tpu_custom_call.1} parent=1 // pred_check_branch
      %110 = sbr.rel (0) target = $region57
    $region56: #{tpu_custom_call.1} parent=1 // pred_region
      %111 = dma.done [#allocation9], 2304
    $region57: #{tpu_custom_call.1} parent=1 // pred_fallthru
      _
    // Predicated region
    $region58: #{tpu_custom_call.1} parent=1 // pred_check
      _
    $region59: #{tpu_custom_call.1} parent=1 // pred_check_branch
      %113 = sbr.rel (0) target = $region61
    $region60: #{tpu_custom_call.1} parent=1 // pred_region
      %114 = dma.done [#allocation12], 1024
    $region61: #{tpu_custom_call.1} parent=1 // pred_fallthru
      _
    %v116 = vld [vmem:[#allocation2] sm:$0xff]
    %v117 = vld [vmem:[#allocation2 + $0x8] sm:$0xff]
    %v118 = vld [vmem:[#allocation2 + $0x10] sm:$0xff]
    %v119 = vld [vmem:[#allocation2 + $0x18] sm:$0xff]
    %v120 = vld [vmem:[#allocation2 + $0x20] sm:$0xff]
    %v121 = vld [vmem:[#allocation2 + $0x28] sm:$0xff]
    %v122 = vld [vmem:[#allocation2 + $0x30] sm:$0xff]
    %v123 = vld [vmem:[#allocation2 + $0x38] sm:$0xff]
    %v124 = vld [vmem:[#allocation2 + $0x40] sm:$0xff]
    %v125 = vld [vmem:[#allocation2 + $0x48] sm:$0xff]
    %v126 = vld [vmem:[#allocation2 + $0x50] sm:$0xff]
    %v127 = vld [vmem:[#allocation2 + $0x58] sm:$0xff]
    %v128 = vld [vmem:[#allocation2 + $0x60] sm:$0xff]
    %v129 = vld [vmem:[#allocation2 + $0x68] sm:$0xff]
    %v130 = vld [vmem:[#allocation2 + $0x70] sm:$0xff]
    %v131 = vld [vmem:[#allocation2 + $0x78] sm:$0xff]
    %v132 = vld [vmem:[#allocation5] sm:$0xf]
    %v133 = vld [vmem:[#allocation5 + $0x4] sm:$0xf]
    %v134 = vld [vmem:[#allocation5 + $0x8] sm:$0xf]
    %v135 = vld [vmem:[#allocation5 + $0xc] sm:$0xf]
    %v136 = vld [vmem:[#allocation5 + $0x10] sm:$0xf]
    %v137 = vld [vmem:[#allocation5 + $0x14] sm:$0xf]
    %v138 = vld [vmem:[#allocation5 + $0x18] sm:$0xf]
    %v139 = vld [vmem:[#allocation5 + $0x1c] sm:$0xf]
    %v140 = vld [vmem:[#allocation5 + $0x20] sm:$0xf]
    %v141 = vld [vmem:[#allocation5 + $0x24] sm:$0xf]
    %v142 = vld [vmem:[#allocation5 + $0x28] sm:$0xf]
    %v143 = vld [vmem:[#allocation5 + $0x2c] sm:$0xf]
    %v144 = vld [vmem:[#allocation5 + $0x30] sm:$0xf]
    %v145 = vld [vmem:[#allocation5 + $0x34] sm:$0xf]
    %v146 = vld [vmem:[#allocation5 + $0x38] sm:$0xf]
    %v147 = vld [vmem:[#allocation5 + $0x3c] sm:$0xf]
    %v148 = vld [vmem:[#allocation5 + $0x40] sm:$0xf]
    %v149 = vld [vmem:[#allocation5 + $0x44] sm:$0xf]
    %v150 = vld [vmem:[#allocation5 + $0x48] sm:$0xf]
    %v151 = vld [vmem:[#allocation5 + $0x4c] sm:$0xf]
    %v152 = vld [vmem:[#allocation5 + $0x50] sm:$0xf]
    %v153 = vld [vmem:[#allocation5 + $0x54] sm:$0xf]
    %v154 = vld [vmem:[#allocation5 + $0x58] sm:$0xf]
    %v155 = vld [vmem:[#allocation5 + $0x5c] sm:$0xf]
    %v156 = vld [vmem:[#allocation5 + $0x60] sm:$0xf]
    %v157 = vld [vmem:[#allocation5 + $0x64] sm:$0xf]
    %v158 = vld [vmem:[#allocation5 + $0x68] sm:$0xf]
    %v159 = vld [vmem:[#allocation5 + $0x6c] sm:$0xf]
    %v160 = vld [vmem:[#allocation5 + $0x70] sm:$0xf]
    %v161 = vld [vmem:[#allocation5 + $0x74] sm:$0xf]
    %v162 = vld [vmem:[#allocation5 + $0x78] sm:$0xf]
    %v163 = vld [vmem:[#allocation5 + $0x7c] sm:$0xf]
    %v164 = vld [vmem:[%s2] sm:$0x1]
    %v166 = vlaneseq
    %v167 = vshrl.u32 %v166, 7
    %v168 = vsub.s32 0, %v167
    %v169 = vrot.slane %v164, %v168
    %v187 = vunpack.c.l.b16 %v116
    %v188 = vunpack.c.h.b16 %v116
    %v189 = vunpack.c.l.b16 %v117
    %v190 = vunpack.c.h.b16 %v117
    %v191 = vunpack.c.l.b16 %v118
    %v192 = vunpack.c.h.b16 %v118
    %v193 = vunpack.c.l.b16 %v119
    %v194 = vunpack.c.h.b16 %v119
    %v195 = vunpack.c.l.b16 %v120
    %v196 = vunpack.c.h.b16 %v120
    %v197 = vunpack.c.l.b16 %v121
    %v198 = vunpack.c.h.b16 %v121
    %v199 = vunpack.c.l.b16 %v122
    %v200 = vunpack.c.h.b16 %v122
    %v201 = vunpack.c.l.b16 %v123
    %v202 = vunpack.c.h.b16 %v123
    %v203 = vunpack.c.l.b16 %v124
    %v204 = vunpack.c.h.b16 %v124
    %v205 = vunpack.c.l.b16 %v125
    %v206 = vunpack.c.h.b16 %v125
    %v207 = vunpack.c.l.b16 %v126
    %v208 = vunpack.c.h.b16 %v126
    %v209 = vunpack.c.l.b16 %v127
    %v210 = vunpack.c.h.b16 %v127
    %v211 = vunpack.c.l.b16 %v128
    %v212 = vunpack.c.h.b16 %v128
    %v213 = vunpack.c.l.b16 %v129
    %v214 = vunpack.c.h.b16 %v129
    %v215 = vunpack.c.l.b16 %v130
    %v216 = vunpack.c.h.b16 %v130
    %v217 = vunpack.c.l.b16 %v131
    %v218 = vunpack.c.h.b16 %v131
    %v219 = vpack.c.b16 %v189, %v187
    %v220 = vpack.c.b16 %v190, %v188
    %v221 = vpack.c.b16 %v193, %v191
    %v222 = vpack.c.b16 %v194, %v192
    %v223 = vpack.c.b16 %v197, %v195
    %v224 = vpack.c.b16 %v198, %v196
    %v225 = vpack.c.b16 %v201, %v199
    %v226 = vpack.c.b16 %v202, %v200
    %v227 = vpack.c.b16 %v205, %v203
    %v228 = vpack.c.b16 %v206, %v204
    %v229 = vpack.c.b16 %v209, %v207
    %v230 = vpack.c.b16 %v210, %v208
    %v231 = vpack.c.b16 %v213, %v211
    %v232 = vpack.c.b16 %v214, %v212
    %v233 = vpack.c.b16 %v217, %v215
    %v234 = vpack.c.b16 %v218, %v216
    %v283 = vunpack.c.l.b16 %v132
    %v284 = vunpack.c.l.b16 %v133
    %v285 = vunpack.c.l.b16 %v134
    %v286 = vunpack.c.l.b16 %v135
    %v287 = vunpack.c.l.b16 %v136
    %v288 = vunpack.c.l.b16 %v137
    %v289 = vunpack.c.l.b16 %v138
    %v290 = vunpack.c.l.b16 %v139
    %v291 = vunpack.c.l.b16 %v140
    %v292 = vunpack.c.l.b16 %v141
    %v293 = vunpack.c.l.b16 %v142
    %v294 = vunpack.c.l.b16 %v143
    %v295 = vunpack.c.l.b16 %v144
    %v296 = vunpack.c.l.b16 %v145
    %v297 = vunpack.c.l.b16 %v146
    %v298 = vunpack.c.l.b16 %v147
    %v299 = vunpack.c.l.b16 %v148
    %v300 = vunpack.c.l.b16 %v149
    %v301 = vunpack.c.l.b16 %v150
    %v302 = vunpack.c.l.b16 %v151
    %v303 = vunpack.c.l.b16 %v152
    %v304 = vunpack.c.l.b16 %v153
    %v305 = vunpack.c.l.b16 %v154
    %v306 = vunpack.c.l.b16 %v155
    %v307 = vunpack.c.l.b16 %v156
    %v308 = vunpack.c.l.b16 %v157
    %v309 = vunpack.c.l.b16 %v158
    %v310 = vunpack.c.l.b16 %v159
    %v311 = vunpack.c.l.b16 %v160
    %v312 = vunpack.c.l.b16 %v161
    %v313 = vunpack.c.l.b16 %v162
    %v314 = vunpack.c.l.b16 %v163
    %v315 = vpack.c.b16 %v284, %v283
    %v316 = vpack.c.b16 %v286, %v285
    %v317 = vpack.c.b16 %v288, %v287
    %v318 = vpack.c.b16 %v290, %v289
    %v319 = vpack.c.b16 %v292, %v291
    %v320 = vpack.c.b16 %v294, %v293
    %v321 = vpack.c.b16 %v296, %v295
    %v322 = vpack.c.b16 %v298, %v297
    %v323 = vpack.c.b16 %v300, %v299
    %v324 = vpack.c.b16 %v302, %v301
    %v325 = vpack.c.b16 %v304, %v303
    %v326 = vpack.c.b16 %v306, %v305
    %v327 = vpack.c.b16 %v308, %v307
    %v328 = vpack.c.b16 %v310, %v309
    %v329 = vpack.c.b16 %v312, %v311
    %v330 = vpack.c.b16 %v314, %v313
    %347 = vmatprep.subr.bf16.mxu0 0
    %348 = vmatpush1.bf16.msra.mxu0 %v315
    %349 = vmatprep.subr.bf16.mxu0 0
    %350 = vmatpush1.bf16.msra.mxu0 %v316
    %351 = vmatprep.subr.bf16.mxu0 0
    %352 = vmatpush1.bf16.msra.mxu0 %v317
    %353 = vmatprep.subr.bf16.mxu0 0
    %354 = vmatpush1.bf16.msra.mxu0 %v318
    %355 = vmatprep.subr.bf16.mxu0 0
    %356 = vmatpush1.bf16.msra.mxu0 %v319
    %357 = vmatprep.subr.bf16.mxu0 0
    %358 = vmatpush1.bf16.msra.mxu0 %v320
    %359 = vmatprep.subr.bf16.mxu0 0
    %360 = vmatpush1.bf16.msra.mxu0 %v321
    %361 = vmatprep.subr.bf16.mxu0 0
    %362 = vmatpush1.bf16.msra.mxu0 %v322
    %363 = vmatprep.subr.bf16.mxu0 0
    %364 = vmatpush1.bf16.msra.mxu0 %v323
    %365 = vmatprep.subr.bf16.mxu0 0
    %366 = vmatpush1.bf16.msra.mxu0 %v324
    %367 = vmatprep.subr.bf16.mxu0 0
    %368 = vmatpush1.bf16.msra.mxu0 %v325
    %369 = vmatprep.subr.bf16.mxu0 0
    %370 = vmatpush1.bf16.msra.mxu0 %v326
    %371 = vmatprep.subr.bf16.mxu0 0
    %372 = vmatpush1.bf16.msra.mxu0 %v327
    %373 = vmatprep.subr.bf16.mxu0 0
    %374 = vmatpush1.bf16.msra.mxu0 %v328
    %375 = vmatprep.subr.bf16.mxu0 0
    %376 = vmatpush1.bf16.msra.mxu0 %v329
    %377 = vmatprep.subr.bf16.mxu0 0
    %378 = vmatpush1.bf16.msra.mxu0 %v330
    %379 = vmatprep.mubr.bf16.mxu0 %v220
    %380 = vmatmul.mubr.bf16.gmra.mrb[0].mxu0 %v219
    %v381 = vpop.f32.mrb[0].mxu0
    %v382 = vadd.f32 %v169, %v381
    %v383 = vpop.f32.mrb[0].mxu0
    %v384 = vpop.f32.mrb[0].mxu0
    %v385 = vadd.f32 %v169, %v384
    %v386 = vpop.f32.mrb[0].mxu0
    %387 = vmatprep.mubr.bf16.mxu0 %v222
    %388 = vmatmul.mubr.bf16.gmra.mrb[0].mxu0 %v221
    %v389 = vpop.f32.mrb[0].mxu0
    %v390 = vadd.f32 %v169, %v389
    %v391 = vpop.f32.mrb[0].mxu0
    %v392 = vpop.f32.mrb[0].mxu0
    %v393 = vadd.f32 %v169, %v392
    %v394 = vpop.f32.mrb[0].mxu0
    %395 = vmatprep.mubr.bf16.mxu0 %v224
    %396 = vmatmul.mubr.bf16.gmra.mrb[0].mxu0 %v223
    %v397 = vpop.f32.mrb[0].mxu0
    %v398 = vadd.f32 %v169, %v397
    %v399 = vpop.f32.mrb[0].mxu0
    %v400 = vpop.f32.mrb[0].mxu0
    %v401 = vadd.f32 %v169, %v400
    %v402 = vpop.f32.mrb[0].mxu0
    %403 = vmatprep.mubr.bf16.mxu0 %v226
    %404 = vmatmul.mubr.bf16.gmra.mrb[0].mxu0 %v225
    %v405 = vpop.f32.mrb[0].mxu0
    %v406 = vadd.f32 %v169, %v405
    %v407 = vpop.f32.mrb[0].mxu0
    %v408 = vpop.f32.mrb[0].mxu0
    %v409 = vadd.f32 %v169, %v408
    %v410 = vpop.f32.mrb[0].mxu0
    %411 = vmatprep.mubr.bf16.mxu0 %v228
    %412 = vmatmul.mubr.bf16.gmra.mrb[0].mxu0 %v227
    %v413 = vpop.f32.mrb[0].mxu0
    %v414 = vadd.f32 %v169, %v413
    %v415 = vpop.f32.mrb[0].mxu0
    %v416 = vpop.f32.mrb[0].mxu0
    %v417 = vadd.f32 %v169, %v416
    %v418 = vpop.f32.mrb[0].mxu0
    %419 = vmatprep.mubr.bf16.mxu0 %v230
    %420 = vmatmul.mubr.bf16.gmra.mrb[0].mxu0 %v229
    %v421 = vpop.f32.mrb[0].mxu0
    %v422 = vadd.f32 %v169, %v421
    %v423 = vpop.f32.mrb[0].mxu0
    %v424 = vpop.f32.mrb[0].mxu0
    %v425 = vadd.f32 %v169, %v424
    %v426 = vpop.f32.mrb[0].mxu0
    %427 = vmatprep.mubr.bf16.mxu0 %v232
    %428 = vmatmul.mubr.bf16.gmra.mrb[0].mxu0 %v231
    %v429 = vpop.f32.mrb[0].mxu0
    %v430 = vadd.f32 %v169, %v429
    %v431 = vpop.f32.mrb[0].mxu0
    %v432 = vpop.f32.mrb[0].mxu0
    %v433 = vadd.f32 %v169, %v432
    %v434 = vpop.f32.mrb[0].mxu0
    %435 = vmatprep.mubr.bf16.mxu0 %v234
    %436 = vmatmul.mubr.bf16.gmra.mrb[0].mxu0 %v233
    %v437 = vpop.f32.mrb[0].mxu0
    %v438 = vadd.f32 %v169, %v437
    %v439 = vpop.f32.mrb[0].mxu0
    %v440 = vpop.f32.mrb[0].mxu0
    %v441 = vadd.f32 %v169, %v440
    %v442 = vpop.f32.mrb[0].mxu0
    %443 = vdwg.mxu0
    %v444 = vmax.f32 %v382, 0.0
    %v445 = vmax.f32 %v385, 0.0
    %v446 = vmax.f32 %v390, 0.0
    %v447 = vmax.f32 %v393, 0.0
    %v448 = vmax.f32 %v398, 0.0
    %v449 = vmax.f32 %v401, 0.0
    %v450 = vmax.f32 %v406, 0.0
    %v451 = vmax.f32 %v409, 0.0
    %v452 = vmax.f32 %v414, 0.0
    %v453 = vmax.f32 %v417, 0.0
    %v454 = vmax.f32 %v422, 0.0
    %v455 = vmax.f32 %v425, 0.0
    %v456 = vmax.f32 %v430, 0.0
    %v457 = vmax.f32 %v433, 0.0
    %v458 = vmax.f32 %v438, 0.0
    %v459 = vmax.f32 %v441, 0.0
    %v460 = vpack.c.bf16 %v445, %v444
    %v461 = vpack.c.bf16 %v447, %v446
    %v462 = vpack.c.bf16 %v449, %v448
    %v463 = vpack.c.bf16 %v451, %v450
    %v464 = vpack.c.bf16 %v453, %v452
    %v465 = vpack.c.bf16 %v455, %v454
    %v466 = vpack.c.bf16 %v457, %v456
    %v467 = vpack.c.bf16 %v459, %v458
    %v468 = vld [vmem:[#allocation7] sm:$0xf]
    %v469 = vld [vmem:[#allocation7 + $0x4] sm:$0xf]
    %v470 = vld [vmem:[#allocation7 + $0x8] sm:$0xf]
    %v471 = vld [vmem:[#allocation7 + $0xc] sm:$0xf]
    %v472 = vld [vmem:[#allocation7 + $0x10] sm:$0xf]
    %v473 = vld [vmem:[#allocation7 + $0x14] sm:$0xf]
    %v474 = vld [vmem:[#allocation7 + $0x18] sm:$0xf]
    %v475 = vld [vmem:[#allocation7 + $0x1c] sm:$0xf]
    %v476 = vld [vmem:[#allocation7 + $0x20] sm:$0xf]
    %v477 = vld [vmem:[#allocation7 + $0x24] sm:$0xf]
    %v478 = vld [vmem:[#allocation7 + $0x28] sm:$0xf]
    %v479 = vld [vmem:[#allocation7 + $0x2c] sm:$0xf]
    %v480 = vld [vmem:[#allocation7 + $0x30] sm:$0xf]
    %v481 = vld [vmem:[#allocation7 + $0x34] sm:$0xf]
    %v482 = vld [vmem:[#allocation7 + $0x38] sm:$0xf]
    %v483 = vld [vmem:[#allocation7 + $0x3c] sm:$0xf]
    %v484 = vld [vmem:[#allocation7 + $0x40] sm:$0xf]
    %v485 = vld [vmem:[#allocation7 + $0x44] sm:$0xf]
    %v486 = vld [vmem:[#allocation7 + $0x48] sm:$0xf]
    %v487 = vld [vmem:[#allocation7 + $0x4c] sm:$0xf]
    %v488 = vld [vmem:[#allocation7 + $0x50] sm:$0xf]
    %v489 = vld [vmem:[#allocation7 + $0x54] sm:$0xf]
    %v490 = vld [vmem:[#allocation7 + $0x58] sm:$0xf]
    %v491 = vld [vmem:[#allocation7 + $0x5c] sm:$0xf]
    %v492 = vld [vmem:[#allocation7 + $0x60] sm:$0xf]
    %v493 = vld [vmem:[#allocation7 + $0x64] sm:$0xf]
    %v494 = vld [vmem:[#allocation7 + $0x68] sm:$0xf]
    %v495 = vld [vmem:[#allocation7 + $0x6c] sm:$0xf]
    %v496 = vld [vmem:[#allocation7 + $0x70] sm:$0xf]
    %v497 = vld [vmem:[#allocation7 + $0x74] sm:$0xf]
    %v498 = vld [vmem:[#allocation7 + $0x78] sm:$0xf]
    %v499 = vld [vmem:[#allocation7 + $0x7c] sm:$0xf]
    %v500 = vld [vmem:[#allocation7 + $0x80] sm:$0xf]
    %v501 = vld [vmem:[#allocation7 + $0x84] sm:$0xf]
    %v502 = vld [vmem:[#allocation7 + $0x88] sm:$0xf]
    %v503 = vld [vmem:[#allocation7 + $0x8c] sm:$0xf]
    %v540 = vunpack.c.l.b16 %v468
    %v541 = vunpack.c.l.b16 %v469
    %v542 = vunpack.c.l.b16 %v470
    %v543 = vunpack.c.l.b16 %v471
    %v544 = vunpack.c.l.b16 %v472
    %v545 = vunpack.c.l.b16 %v473
    %v546 = vunpack.c.l.b16 %v474
    %v547 = vunpack.c.l.b16 %v475
    %v548 = vunpack.c.l.b16 %v476
    %v549 = vunpack.c.l.b16 %v477
    %v550 = vunpack.c.l.b16 %v478
    %v551 = vunpack.c.l.b16 %v479
    %v552 = vunpack.c.l.b16 %v480
    %v553 = vunpack.c.l.b16 %v481
    %v554 = vunpack.c.l.b16 %v482
    %v555 = vunpack.c.l.b16 %v483
    %v556 = vunpack.c.l.b16 %v484
    %v557 = vunpack.c.l.b16 %v485
    %v558 = vunpack.c.l.b16 %v486
    %v559 = vunpack.c.l.b16 %v487
    %v560 = vunpack.c.l.b16 %v488
    %v561 = vunpack.c.l.b16 %v489
    %v562 = vunpack.c.l.b16 %v490
    %v563 = vunpack.c.l.b16 %v491
    %v564 = vunpack.c.l.b16 %v492
    %v565 = vunpack.c.l.b16 %v493
    %v566 = vunpack.c.l.b16 %v494
    %v567 = vunpack.c.l.b16 %v495
    %v568 = vunpack.c.l.b16 %v496
    %v569 = vunpack.c.l.b16 %v497
    %v570 = vunpack.c.l.b16 %v498
    %v571 = vunpack.c.l.b16 %v499
    %v572 = vunpack.c.l.b16 %v500
    %v573 = vunpack.c.l.b16 %v501
    %v574 = vunpack.c.l.b16 %v502
    %v575 = vunpack.c.l.b16 %v503
    %v576 = vpack.c.b16 %v541, %v540
    %v577 = vpack.c.b16 %v543, %v542
    %v578 = vpack.c.b16 %v545, %v544
    %v579 = vpack.c.b16 %v547, %v546
    %v580 = vpack.c.b16 %v549, %v548
    %v581 = vpack.c.b16 %v551, %v550
    %v582 = vpack.c.b16 %v553, %v552
    %v583 = vpack.c.b16 %v555, %v554
    %v584 = vpack.c.b16 %v557, %v556
    %v585 = vpack.c.b16 %v559, %v558
    %v586 = vpack.c.b16 %v561, %v560
    %v587 = vpack.c.b16 %v563, %v562
    %v588 = vpack.c.b16 %v565, %v564
    %v589 = vpack.c.b16 %v567, %v566
    %v590 = vpack.c.b16 %v569, %v568
    %v591 = vpack.c.b16 %v571, %v570
    %v592 = vpack.c.b16 %v573, %v572
    %v593 = vpack.c.b16 %v575, %v574
    %612 = vmatprep.subr.bf16.mxu0 0
    %613 = vmatpush1.bf16.msra.mxu0 %v460
    %614 = vmatprep.subr.bf16.mxu0 0
    %615 = vmatpush1.bf16.msra.mxu0 %v461
    %616 = vmatprep.subr.bf16.mxu0 0
    %617 = vmatpush1.bf16.msra.mxu0 %v462
    %618 = vmatprep.subr.bf16.mxu0 0
    %619 = vmatpush1.bf16.msra.mxu0 %v463
    %620 = vmatprep.subr.bf16.mxu0 0
    %621 = vmatpush1.bf16.msra.mxu0 %v464
    %622 = vmatprep.subr.bf16.mxu0 0
    %623 = vmatpush1.bf16.msra.mxu0 %v465
    %624 = vmatprep.subr.bf16.mxu0 0
    %625 = vmatpush1.bf16.msra.mxu0 %v466
    %626 = vmatprep.subr.bf16.mxu0 0
    %627 = vmatpush1.bf16.msra.mxu0 %v467
    %628 = vmatprep.subr.bf16.mxu0 0
    %629 = vmatpush1.bf16.msra.mxu0 0
    %630 = vmatprep.subr.bf16.mxu0 0
    %631 = vmatpush1.bf16.msra.mxu0 0
    %632 = vmatprep.subr.bf16.mxu0 0
    %633 = vmatpush1.bf16.msra.mxu0 0
    %634 = vmatprep.subr.bf16.mxu0 0
    %635 = vmatpush1.bf16.msra.mxu0 0
    %636 = vmatprep.subr.bf16.mxu0 0
    %637 = vmatpush1.bf16.msra.mxu0 0
    %638 = vmatprep.subr.bf16.mxu0 0
    %639 = vmatpush1.bf16.msra.mxu0 0
    %640 = vmatprep.subr.bf16.mxu0 0
    %641 = vmatpush1.bf16.msra.mxu0 0
    %642 = vmatprep.subr.bf16.mxu0 0
    %643 = vmatpush1.bf16.msra.mxu0 0
    %644 = vmatprep.mubr.bf16.mxu0 0
    %645 = vmatmul.mubr.bf16.gmra.mrb[0].mxu0 %v576
    %v646 = vpop.f32.mrb[0].mxu0
    %v647 = vadd.f32 0.0, %v646
    %v648 = vpop.f32.mrb[0].mxu0
    %v649 = vpop.f32.mrb[0].mxu0
    %v650 = vadd.f32 0.0, %v649
    %v651 = vpop.f32.mrb[0].mxu0
    %652 = vmatprep.mubr.bf16.mxu0 0
    %653 = vmatmul.mubr.bf16.gmra.mrb[0].mxu0 %v577
    %v654 = vpop.f32.mrb[0].mxu0
    %v655 = vadd.f32 0.0, %v654
    %v656 = vpop.f32.mrb[0].mxu0
    %v657 = vpop.f32.mrb[0].mxu0
    %v658 = vadd.f32 0.0, %v657
    %v659 = vpop.f32.mrb[0].mxu0
    %660 = vmatprep.mubr.bf16.mxu0 0
    %661 = vmatmul.mubr.bf16.gmra.mrb[0].mxu0 %v578
    %v662 = vpop.f32.mrb[0].mxu0
    %v663 = vadd.f32 0.0, %v662
    %v664 = vpop.f32.mrb[0].mxu0
    %v665 = vpop.f32.mrb[0].mxu0
    %v666 = vadd.f32 0.0, %v665
    %v667 = vpop.f32.mrb[0].mxu0
    %668 = vmatprep.mubr.bf16.mxu0 0
    %669 = vmatmul.mubr.bf16.gmra.mrb[0].mxu0 %v579
    %v670 = vpop.f32.mrb[0].mxu0
    %v671 = vadd.f32 0.0, %v670
    %v672 = vpop.f32.mrb[0].mxu0
    %v673 = vpop.f32.mrb[0].mxu0
    %v674 = vadd.f32 0.0, %v673
    %v675 = vpop.f32.mrb[0].mxu0
    %676 = vmatprep.mubr.bf16.mxu0 0
    %677 = vmatmul.mubr.bf16.gmra.mrb[0].mxu0 %v580
    %v678 = vpop.f32.mrb[0].mxu0
    %v679 = vadd.f32 0.0, %v678
    %v680 = vpop.f32.mrb[0].mxu0
    %v681 = vpop.f32.mrb[0].mxu0
    %v682 = vadd.f32 0.0, %v681
    %v683 = vpop.f32.mrb[0].mxu0
    %684 = vmatprep.mubr.bf16.mxu0 0
    %685 = vmatmul.mubr.bf16.gmra.mrb[0].mxu0 %v581
    %v686 = vpop.f32.mrb[0].mxu0
    %v687 = vadd.f32 0.0, %v686
    %v688 = vpop.f32.mrb[0].mxu0
    %v689 = vpop.f32.mrb[0].mxu0
    %v690 = vadd.f32 0.0, %v689
    %v691 = vpop.f32.mrb[0].mxu0
    %692 = vmatprep.mubr.bf16.mxu0 0
    %693 = vmatmul.mubr.bf16.gmra.mrb[0].mxu0 %v582
    %v694 = vpop.f32.mrb[0].mxu0
    %v695 = vadd.f32 0.0, %v694
    %v696 = vpop.f32.mrb[0].mxu0
    %v697 = vpop.f32.mrb[0].mxu0
    %v698 = vadd.f32 0.0, %v697
    %v699 = vpop.f32.mrb[0].mxu0
    %700 = vmatprep.mubr.bf16.mxu0 0
    %701 = vmatmul.mubr.bf16.gmra.mrb[0].mxu0 %v583
    %v702 = vpop.f32.mrb[0].mxu0
    %v703 = vadd.f32 0.0, %v702
    %v704 = vpop.f32.mrb[0].mxu0
    %v705 = vpop.f32.mrb[0].mxu0
    %v706 = vadd.f32 0.0, %v705
    %v707 = vpop.f32.mrb[0].mxu0
    %708 = vmatprep.mubr.bf16.mxu0 0
    %709 = vmatmul.mubr.bf16.gmra.mrb[0].mxu0 %v584
    %v710 = vpop.f32.mrb[0].mxu0
    %v711 = vadd.f32 0.0, %v710
    %v712 = vpop.f32.mrb[0].mxu0
    %v713 = vpop.f32.mrb[0].mxu0
    %v714 = vadd.f32 0.0, %v713
    %v715 = vpop.f32.mrb[0].mxu0
    %716 = vmatprep.mubr.bf16.mxu0 0
    %717 = vmatmul.mubr.bf16.gmra.mrb[0].mxu0 %v585
    %v718 = vpop.f32.mrb[0].mxu0
    %v719 = vadd.f32 0.0, %v718
    %v720 = vpop.f32.mrb[0].mxu0
    %v721 = vpop.f32.mrb[0].mxu0
    %v722 = vadd.f32 0.0, %v721
    %v723 = vpop.f32.mrb[0].mxu0
    %724 = vmatprep.mubr.bf16.mxu0 0
    %725 = vmatmul.mubr.bf16.gmra.mrb[0].mxu0 %v586
    %v726 = vpop.f32.mrb[0].mxu0
    %v727 = vadd.f32 0.0, %v726
    %v728 = vpop.f32.mrb[0].mxu0
    %v729 = vpop.f32.mrb[0].mxu0
    %v730 = vadd.f32 0.0, %v729
    %v731 = vpop.f32.mrb[0].mxu0
    %732 = vmatprep.mubr.bf16.mxu0 0
    %733 = vmatmul.mubr.bf16.gmra.mrb[0].mxu0 %v587
    %v734 = vpop.f32.mrb[0].mxu0
    %v735 = vadd.f32 0.0, %v734
    %v736 = vpop.f32.mrb[0].mxu0
    %v737 = vpop.f32.mrb[0].mxu0
    %v738 = vadd.f32 0.0, %v737
    %v739 = vpop.f32.mrb[0].mxu0
    %740 = vmatprep.mubr.bf16.mxu0 0
    %741 = vmatmul.mubr.bf16.gmra.mrb[0].mxu0 %v588
    %v742 = vpop.f32.mrb[0].mxu0
    %v743 = vadd.f32 0.0, %v742
    %v744 = vpop.f32.mrb[0].mxu0
    %v745 = vpop.f32.mrb[0].mxu0
    %v746 = vadd.f32 0.0, %v745
    %v747 = vpop.f32.mrb[0].mxu0
    %748 = vmatprep.mubr.bf16.mxu0 0
    %749 = vmatmul.mubr.bf16.gmra.mrb[0].mxu0 %v589
    %v750 = vpop.f32.mrb[0].mxu0
    %v751 = vadd.f32 0.0, %v750
    %v752 = vpop.f32.mrb[0].mxu0
    %v753 = vpop.f32.mrb[0].mxu0
    %v754 = vadd.f32 0.0, %v753
    %v755 = vpop.f32.mrb[0].mxu0
    %756 = vmatprep.mubr.bf16.mxu0 0
    %757 = vmatmul.mubr.bf16.gmra.mrb[0].mxu0 %v590
    %v758 = vpop.f32.mrb[0].mxu0
    %v759 = vadd.f32 0.0, %v758
    %v760 = vpop.f32.mrb[0].mxu0
    %v761 = vpop.f32.mrb[0].mxu0
    %v762 = vadd.f32 0.0, %v761
    %v763 = vpop.f32.mrb[0].mxu0
    %764 = vmatprep.mubr.bf16.mxu0 0
    %765 = vmatmul.mubr.bf16.gmra.mrb[0].mxu0 %v591
    %v766 = vpop.f32.mrb[0].mxu0
    %v767 = vadd.f32 0.0, %v766
    %v768 = vpop.f32.mrb[0].mxu0
    %v769 = vpop.f32.mrb[0].mxu0
    %v770 = vadd.f32 0.0, %v769
    %v771 = vpop.f32.mrb[0].mxu0
    %772 = vmatprep.mubr.bf16.mxu0 0
    %773 = vmatmul.mubr.bf16.gmra.mrb[0].mxu0 %v592
    %v774 = vpop.f32.mrb[0].mxu0
    %v775 = vadd.f32 0.0, %v774
    %v776 = vpop.f32.mrb[0].mxu0
    %v777 = vpop.f32.mrb[0].mxu0
    %v778 = vadd.f32 0.0, %v777
    %v779 = vpop.f32.mrb[0].mxu0
    %780 = vmatprep.mubr.bf16.mxu0 0
    %781 = vmatmul.mubr.bf16.gmra.mrb[0].mxu0 %v593
    %v782 = vpop.f32.mrb[0].mxu0
    %v783 = vadd.f32 0.0, %v782
    %v784 = vpop.f32.mrb[0].mxu0
    %v785 = vpop.f32.mrb[0].mxu0
    %v786 = vadd.f32 0.0, %v785
    %v787 = vpop.f32.mrb[0].mxu0
    %788 = vdwg.mxu0
    %v789 = vmax.f32 %v647, %v663
    %v790 = vmax.f32 %v650, %v666
    %v791 = vmax.f32 %v655, %v671
    %v792 = vmax.f32 %v658, %v674
    %v793 = vmax.f32 %v679, %v695
    %v794 = vmax.f32 %v682, %v698
    %v795 = vmax.f32 %v687, %v703
    %v796 = vmax.f32 %v690, %v706
    %v797 = vmax.f32 %v789, %v793
    %v798 = vmax.f32 %v790, %v794
    %v799 = vmax.f32 %v791, %v795
    %v800 = vmax.f32 %v792, %v796
    %v801 = vmax.f32 %v711, %v727
    %v802 = vmax.f32 %v714, %v730
    %v803 = vmax.f32 %v719, %v735
    %v804 = vmax.f32 %v722, %v738
    %v805 = vmax.f32 %v743, %v759
    %v806 = vmax.f32 %v746, %v762
    %v807 = vmax.f32 %v751, %v767
    %v808 = vmax.f32 %v754, %v770
    %v809 = vmax.f32 %v805, %v775
    %v810 = vmax.f32 %v806, %v778
    %v811 = vmax.f32 %v807, %v783
    %v812 = vmax.f32 %v808, %v786
    %v813 = vmax.f32 %v801, %v809
    %v814 = vmax.f32 %v802, %v810
    %v815 = vmax.f32 %v803, %v811
    %v816 = vmax.f32 %v804, %v812
    %v817 = vmax.f32 %v797, %v813
    %v818 = vmax.f32 %v798, %v814
    %v819 = vmax.f32 %v799, %v815
    %v820 = vmax.f32 %v800, %v816
    %v821 = vpack.c.bf16 %v818, %v817
    %v822 = vpack.c.bf16 %v820, %v819
    %v823 = vld [vmem:[#allocation8] sm:$0xff]
    %v824 = vld [vmem:[#allocation8 + $0x8] sm:$0xff]
    %v825 = vld [vmem:[#allocation8 + $0x10] sm:$0xff]
    %v826 = vld [vmem:[#allocation8 + $0x18] sm:$0xff]
    %v827 = vld [vmem:[#allocation8 + $0x20] sm:$0xf]
    %v828 = vld [vmem:[#allocation8 + $0x24] sm:$0xff]
    %v829 = vld [vmem:[#allocation8 + $0x2c] sm:$0xff]
    %v830 = vld [vmem:[#allocation8 + $0x34] sm:$0xff]
    %v831 = vld [vmem:[#allocation8 + $0x3c] sm:$0xff]
    %v832 = vld [vmem:[#allocation8 + $0x44] sm:$0xf]
    %v833 = vld [vmem:[#allocation8 + $0x48] sm:$0xff]
    %v834 = vld [vmem:[#allocation8 + $0x50] sm:$0xff]
    %v835 = vld [vmem:[#allocation8 + $0x58] sm:$0xff]
    %v836 = vld [vmem:[#allocation8 + $0x60] sm:$0xff]
    %v837 = vld [vmem:[#allocation8 + $0x68] sm:$0xf]
    %v838 = vld [vmem:[#allocation8 + $0x6c] sm:$0xff]
    %v839 = vld [vmem:[#allocation8 + $0x74] sm:$0xff]
    %v840 = vld [vmem:[#allocation8 + $0x7c] sm:$0xff]
    %v841 = vld [vmem:[#allocation8 + $0x84] sm:$0xff]
    %v842 = vld [vmem:[#allocation8 + $0x8c] sm:$0xf]
    %v843 = vld [vmem:[#allocation8 + $0x90] sm:$0xff]
    %v844 = vld [vmem:[#allocation8 + $0x98] sm:$0xff]
    %v845 = vld [vmem:[#allocation8 + $0xa0] sm:$0xff]
    %v846 = vld [vmem:[#allocation8 + $0xa8] sm:$0xff]
    %v847 = vld [vmem:[#allocation8 + $0xb0] sm:$0xf]
    %v848 = vld [vmem:[#allocation8 + $0xb4] sm:$0xff]
    %v849 = vld [vmem:[#allocation8 + $0xbc] sm:$0xff]
    %v850 = vld [vmem:[#allocation8 + $0xc4] sm:$0xff]
    %v851 = vld [vmem:[#allocation8 + $0xcc] sm:$0xff]
    %v852 = vld [vmem:[#allocation8 + $0xd4] sm:$0xf]
    %v853 = vld [vmem:[#allocation8 + $0xd8] sm:$0xff]
    %v854 = vld [vmem:[#allocation8 + $0xe0] sm:$0xff]
    %v855 = vld [vmem:[#allocation8 + $0xe8] sm:$0xff]
    %v856 = vld [vmem:[#allocation8 + $0xf0] sm:$0xff]
    %v857 = vld [vmem:[#allocation8 + $0xf8] sm:$0xf]
    %v858 = vld [vmem:[#allocation8 + $0xfc] sm:$0xff]
    %v859 = vld [vmem:[#allocation8 + $0x104] sm:$0xff]
    %v860 = vld [vmem:[#allocation8 + $0x10c] sm:$0xff]
    %v861 = vld [vmem:[#allocation8 + $0x114] sm:$0xff]
    %v862 = vld [vmem:[#allocation8 + $0x11c] sm:$0xf]
    %v863 = vld [vmem:[#allocation8 + $0x120] sm:$0xff]
    %v864 = vld [vmem:[#allocation8 + $0x128] sm:$0xff]
    %v865 = vld [vmem:[#allocation8 + $0x130] sm:$0xff]
    %v866 = vld [vmem:[#allocation8 + $0x138] sm:$0xff]
    %v867 = vld [vmem:[#allocation8 + $0x140] sm:$0xf]
    %v868 = vld [vmem:[#allocation8 + $0x144] sm:$0xff]
    %v869 = vld [vmem:[#allocation8 + $0x14c] sm:$0xff]
    %v870 = vld [vmem:[#allocation8 + $0x154] sm:$0xff]
    %v871 = vld [vmem:[#allocation8 + $0x15c] sm:$0xff]
    %v872 = vld [vmem:[#allocation8 + $0x164] sm:$0xf]
    %v873 = vld [vmem:[#allocation8 + $0x168] sm:$0xff]
    %v874 = vld [vmem:[#allocation8 + $0x170] sm:$0xff]
    %v875 = vld [vmem:[#allocation8 + $0x178] sm:$0xff]
    %v876 = vld [vmem:[#allocation8 + $0x180] sm:$0xff]
    %v877 = vld [vmem:[#allocation8 + $0x188] sm:$0xf]
    %v878 = vld [vmem:[#allocation8 + $0x18c] sm:$0xff]
    %v879 = vld [vmem:[#allocation8 + $0x194] sm:$0xff]
    %v880 = vld [vmem:[#allocation8 + $0x19c] sm:$0xff]
    %v881 = vld [vmem:[#allocation8 + $0x1a4] sm:$0xff]
    %v882 = vld [vmem:[#allocation8 + $0x1ac] sm:$0xf]
    %v883 = vld [vmem:[#allocation8 + $0x1b0] sm:$0xff]
    %v884 = vld [vmem:[#allocation8 + $0x1b8] sm:$0xff]
    %v885 = vld [vmem:[#allocation8 + $0x1c0] sm:$0xff]
    %v886 = vld [vmem:[#allocation8 + $0x1c8] sm:$0xff]
    %v887 = vld [vmem:[#allocation8 + $0x1d0] sm:$0xf]
    %v888 = vld [vmem:[#allocation8 + $0x1d4] sm:$0xff]
    %v889 = vld [vmem:[#allocation8 + $0x1dc] sm:$0xff]
    %v890 = vld [vmem:[#allocation8 + $0x1e4] sm:$0xff]
    %v891 = vld [vmem:[#allocation8 + $0x1ec] sm:$0xff]
    %v892 = vld [vmem:[#allocation8 + $0x1f4] sm:$0xf]
    %v893 = vld [vmem:[#allocation8 + $0x1f8] sm:$0xff]
    %v894 = vld [vmem:[#allocation8 + $0x200] sm:$0xff]
    %v895 = vld [vmem:[#allocation8 + $0x208] sm:$0xff]
    %v896 = vld [vmem:[#allocation8 + $0x210] sm:$0xff]
    %v897 = vld [vmem:[#allocation8 + $0x218] sm:$0xf]
    %v898 = vld [vmem:[#allocation8 + $0x21c] sm:$0xff]
    %v899 = vld [vmem:[#allocation8 + $0x224] sm:$0xff]
    %v900 = vld [vmem:[#allocation8 + $0x22c] sm:$0xff]
    %v901 = vld [vmem:[#allocation8 + $0x234] sm:$0xff]
    %v902 = vld [vmem:[#allocation8 + $0x23c] sm:$0xf]
    %v983 = vunpack.c.l.b16 %v823
    %v984 = vunpack.c.h.b16 %v823
    %v985 = vunpack.c.l.b16 %v824
    %v986 = vunpack.c.h.b16 %v824
    %v987 = vunpack.c.l.b16 %v825
    %v988 = vunpack.c.h.b16 %v825
    %v989 = vunpack.c.l.b16 %v826
    %v990 = vunpack.c.h.b16 %v826
    %v991 = vunpack.c.l.b16 %v827
    %v992 = vunpack.c.l.b16 %v828
    %v993 = vunpack.c.h.b16 %v828
    %v994 = vunpack.c.l.b16 %v829
    %v995 = vunpack.c.h.b16 %v829
    %v996 = vunpack.c.l.b16 %v830
    %v997 = vunpack.c.h.b16 %v830
    %v998 = vunpack.c.l.b16 %v831
    %v999 = vunpack.c.h.b16 %v831
    %v1000 = vunpack.c.l.b16 %v832
    %v1001 = vunpack.c.l.b16 %v833
    %v1002 = vunpack.c.h.b16 %v833
    %v1003 = vunpack.c.l.b16 %v834
    %v1004 = vunpack.c.h.b16 %v834
    %v1005 = vunpack.c.l.b16 %v835
    %v1006 = vunpack.c.h.b16 %v835
    %v1007 = vunpack.c.l.b16 %v836
    %v1008 = vunpack.c.h.b16 %v836
    %v1009 = vunpack.c.l.b16 %v837
    %v1010 = vunpack.c.l.b16 %v838
    %v1011 = vunpack.c.h.b16 %v838
    %v1012 = vunpack.c.l.b16 %v839
    %v1013 = vunpack.c.h.b16 %v839
    %v1014 = vunpack.c.l.b16 %v840
    %v1015 = vunpack.c.h.b16 %v840
    %v1016 = vunpack.c.l.b16 %v841
    %v1017 = vunpack.c.h.b16 %v841
    %v1018 = vunpack.c.l.b16 %v842
    %v1019 = vunpack.c.l.b16 %v843
    %v1020 = vunpack.c.h.b16 %v843
    %v1021 = vunpack.c.l.b16 %v844
    %v1022 = vunpack.c.h.b16 %v844
    %v1023 = vunpack.c.l.b16 %v845
    %v1024 = vunpack.c.h.b16 %v845
    %v1025 = vunpack.c.l.b16 %v846
    %v1026 = vunpack.c.h.b16 %v846
    %v1027 = vunpack.c.l.b16 %v847
    %v1028 = vunpack.c.l.b16 %v848
    %v1029 = vunpack.c.h.b16 %v848
    %v1030 = vunpack.c.l.b16 %v849
    %v1031 = vunpack.c.h.b16 %v849
    %v1032 = vunpack.c.l.b16 %v850
    %v1033 = vunpack.c.h.b16 %v850
    %v1034 = vunpack.c.l.b16 %v851
    %v1035 = vunpack.c.h.b16 %v851
    %v1036 = vunpack.c.l.b16 %v852
    %v1037 = vunpack.c.l.b16 %v853
    %v1038 = vunpack.c.h.b16 %v853
    %v1039 = vunpack.c.l.b16 %v854
    %v1040 = vunpack.c.h.b16 %v854
    %v1041 = vunpack.c.l.b16 %v855
    %v1042 = vunpack.c.h.b16 %v855
    %v1043 = vunpack.c.l.b16 %v856
    %v1044 = vunpack.c.h.b16 %v856
    %v1045 = vunpack.c.l.b16 %v857
    %v1046 = vunpack.c.l.b16 %v858
    %v1047 = vunpack.c.h.b16 %v858
    %v1048 = vunpack.c.l.b16 %v859
    %v1049 = vunpack.c.h.b16 %v859
    %v1050 = vunpack.c.l.b16 %v860
    %v1051 = vunpack.c.h.b16 %v860
    %v1052 = vunpack.c.l.b16 %v861
    %v1053 = vunpack.c.h.b16 %v861
    %v1054 = vunpack.c.l.b16 %v862
    %v1055 = vunpack.c.l.b16 %v863
    %v1056 = vunpack.c.h.b16 %v863
    %v1057 = vunpack.c.l.b16 %v864
    %v1058 = vunpack.c.h.b16 %v864
    %v1059 = vunpack.c.l.b16 %v865
    %v1060 = vunpack.c.h.b16 %v865
    %v1061 = vunpack.c.l.b16 %v866
    %v1062 = vunpack.c.h.b16 %v866
    %v1063 = vunpack.c.l.b16 %v867
    %v1064 = vunpack.c.l.b16 %v868
    %v1065 = vunpack.c.h.b16 %v868
    %v1066 = vunpack.c.l.b16 %v869
    %v1067 = vunpack.c.h.b16 %v869
    %v1068 = vunpack.c.l.b16 %v870
    %v1069 = vunpack.c.h.b16 %v870
    %v1070 = vunpack.c.l.b16 %v871
    %v1071 = vunpack.c.h.b16 %v871
    %v1072 = vunpack.c.l.b16 %v872
    %v1073 = vunpack.c.l.b16 %v873
    %v1074 = vunpack.c.h.b16 %v873
    %v1075 = vunpack.c.l.b16 %v874
    %v1076 = vunpack.c.h.b16 %v874
    %v1077 = vunpack.c.l.b16 %v875
    %v1078 = vunpack.c.h.b16 %v875
    %v1079 = vunpack.c.l.b16 %v876
    %v1080 = vunpack.c.h.b16 %v876
    %v1081 = vunpack.c.l.b16 %v877
    %v1082 = vunpack.c.l.b16 %v878
    %v1083 = vunpack.c.h.b16 %v878
    %v1084 = vunpack.c.l.b16 %v879
    %v1085 = vunpack.c.h.b16 %v879
    %v1086 = vunpack.c.l.b16 %v880
    %v1087 = vunpack.c.h.b16 %v880
    %v1088 = vunpack.c.l.b16 %v881
    %v1089 = vunpack.c.h.b16 %v881
    %v1090 = vunpack.c.l.b16 %v882
    %v1091 = vunpack.c.l.b16 %v883
    %v1092 = vunpack.c.h.b16 %v883
    %v1093 = vunpack.c.l.b16 %v884
    %v1094 = vunpack.c.h.b16 %v884
    %v1095 = vunpack.c.l.b16 %v885
    %v1096 = vunpack.c.h.b16 %v885
    %v1097 = vunpack.c.l.b16 %v886
    %v1098 = vunpack.c.h.b16 %v886
    %v1099 = vunpack.c.l.b16 %v887
    %v1100 = vunpack.c.l.b16 %v888
    %v1101 = vunpack.c.h.b16 %v888
    %v1102 = vunpack.c.l.b16 %v889
    %v1103 = vunpack.c.h.b16 %v889
    %v1104 = vunpack.c.l.b16 %v890
    %v1105 = vunpack.c.h.b16 %v890
    %v1106 = vunpack.c.l.b16 %v891
    %v1107 = vunpack.c.h.b16 %v891
    %v1108 = vunpack.c.l.b16 %v892
    %v1109 = vunpack.c.l.b16 %v893
    %v1110 = vunpack.c.h.b16 %v893
    %v1111 = vunpack.c.l.b16 %v894
    %v1112 = vunpack.c.h.b16 %v894
    %v1113 = vunpack.c.l.b16 %v895
    %v1114 = vunpack.c.h.b16 %v895
    %v1115 = vunpack.c.l.b16 %v896
    %v1116 = vunpack.c.h.b16 %v896
    %v1117 = vunpack.c.l.b16 %v897
    %v1118 = vunpack.c.l.b16 %v898
    %v1119 = vunpack.c.h.b16 %v898
    %v1120 = vunpack.c.l.b16 %v899
    %v1121 = vunpack.c.h.b16 %v899
    %v1122 = vunpack.c.l.b16 %v900
    %v1123 = vunpack.c.h.b16 %v900
    %v1124 = vunpack.c.l.b16 %v901
    %v1125 = vunpack.c.h.b16 %v901
    %v1126 = vunpack.c.l.b16 %v902
    %v1127 = vpack.c.b16 %v992, %v983
    %v1128 = vpack.c.b16 %v993, %v984
    %v1129 = vpack.c.b16 %v994, %v985
    %v1130 = vpack.c.b16 %v995, %v986
    %v1131 = vpack.c.b16 %v996, %v987
    %v1132 = vpack.c.b16 %v997, %v988
    %v1133 = vpack.c.b16 %v998, %v989
    %v1134 = vpack.c.b16 %v999, %v990
    %v1135 = vpack.c.b16 %v1000, %v991
    %v1136 = vpack.c.b16 %v1010, %v1001
    %v1137 = vpack.c.b16 %v1011, %v1002
    %v1138 = vpack.c.b16 %v1012, %v1003
    %v1139 = vpack.c.b16 %v1013, %v1004
    %v1140 = vpack.c.b16 %v1014, %v1005
    %v1141 = vpack.c.b16 %v1015, %v1006
    %v1142 = vpack.c.b16 %v1016, %v1007
    %v1143 = vpack.c.b16 %v1017, %v1008
    %v1144 = vpack.c.b16 %v1018, %v1009
    %v1145 = vpack.c.b16 %v1028, %v1019
    %v1146 = vpack.c.b16 %v1029, %v1020
    %v1147 = vpack.c.b16 %v1030, %v1021
    %v1148 = vpack.c.b16 %v1031, %v1022
    %v1149 = vpack.c.b16 %v1032, %v1023
    %v1150 = vpack.c.b16 %v1033, %v1024
    %v1151 = vpack.c.b16 %v1034, %v1025
    %v1152 = vpack.c.b16 %v1035, %v1026
    %v1153 = vpack.c.b16 %v1036, %v1027
    %v1154 = vpack.c.b16 %v1046, %v1037
    %v1155 = vpack.c.b16 %v1047, %v1038
    %v1156 = vpack.c.b16 %v1048, %v1039
    %v1157 = vpack.c.b16 %v1049, %v1040
    %v1158 = vpack.c.b16 %v1050, %v1041
    %v1159 = vpack.c.b16 %v1051, %v1042
    %v1160 = vpack.c.b16 %v1052, %v1043
    %v1161 = vpack.c.b16 %v1053, %v1044
    %v1162 = vpack.c.b16 %v1054, %v1045
    %v1163 = vpack.c.b16 %v1064, %v1055
    %v1164 = vpack.c.b16 %v1065, %v1056
    %v1165 = vpack.c.b16 %v1066, %v1057
    %v1166 = vpack.c.b16 %v1067, %v1058
    %v1167 = vpack.c.b16 %v1068, %v1059
    %v1168 = vpack.c.b16 %v1069, %v1060
    %v1169 = vpack.c.b16 %v1070, %v1061
    %v1170 = vpack.c.b16 %v1071, %v1062
    %v1171 = vpack.c.b16 %v1072, %v1063
    %v1172 = vpack.c.b16 %v1082, %v1073
    %v1173 = vpack.c.b16 %v1083, %v1074
    %v1174 = vpack.c.b16 %v1084, %v1075
    %v1175 = vpack.c.b16 %v1085, %v1076
    %v1176 = vpack.c.b16 %v1086, %v1077
    %v1177 = vpack.c.b16 %v1087, %v1078
    %v1178 = vpack.c.b16 %v1088, %v1079
    %v1179 = vpack.c.b16 %v1089, %v1080
    %v1180 = vpack.c.b16 %v1090, %v1081
    %v1181 = vpack.c.b16 %v1100, %v1091
    %v1182 = vpack.c.b16 %v1101, %v1092
    %v1183 = vpack.c.b16 %v1102, %v1093
    %v1184 = vpack.c.b16 %v1103, %v1094
    %v1185 = vpack.c.b16 %v1104, %v1095
    %v1186 = vpack.c.b16 %v1105, %v1096
    %v1187 = vpack.c.b16 %v1106, %v1097
    %v1188 = vpack.c.b16 %v1107, %v1098
    %v1189 = vpack.c.b16 %v1108, %v1099
    %v1190 = vpack.c.b16 %v1118, %v1109
    %v1191 = vpack.c.b16 %v1119, %v1110
    %v1192 = vpack.c.b16 %v1120, %v1111
    %v1193 = vpack.c.b16 %v1121, %v1112
    %v1194 = vpack.c.b16 %v1122, %v1113
    %v1195 = vpack.c.b16 %v1123, %v1114
    %v1196 = vpack.c.b16 %v1124, %v1115
    %v1197 = vpack.c.b16 %v1125, %v1116
    %v1198 = vpack.c.b16 %v1126, %v1117
    %1271 = vmatprep.subr.bf16.mxu0 %v1128
    %1272 = vmatpush1.bf16.msra.mxu0 %v1127
    %1273 = vmatprep.subr.bf16.mxu0 %v1137
    %1274 = vmatpush1.bf16.msra.mxu0 %v1136
    %1275 = vmatprep.subr.bf16.mxu0 %v1146
    %1276 = vmatpush1.bf16.msra.mxu0 %v1145
    %1277 = vmatprep.subr.bf16.mxu0 %v1155
    %1278 = vmatpush1.bf16.msra.mxu0 %v1154
    %1279 = vmatprep.subr.bf16.mxu0 %v1164
    %1280 = vmatpush1.bf16.msra.mxu0 %v1163
    %1281 = vmatprep.subr.bf16.mxu0 %v1173
    %1282 = vmatpush1.bf16.msra.mxu0 %v1172
    %1283 = vmatprep.subr.bf16.mxu0 %v1182
    %1284 = vmatpush1.bf16.msra.mxu0 %v1181
    %1285 = vmatprep.subr.bf16.mxu0 %v1191
    %1286 = vmatpush1.bf16.msra.mxu0 %v1190
    %1287 = vmatprep.subr.bf16.mxu0 0
    %1288 = vmatpush1.bf16.msra.mxu0 0
    %1289 = vmatprep.subr.bf16.mxu0 0
    %1290 = vmatpush1.bf16.msra.mxu0 0
    %1291 = vmatprep.subr.bf16.mxu0 0
    %1292 = vmatpush1.bf16.msra.mxu0 0
    %1293 = vmatprep.subr.bf16.mxu0 0
    %1294 = vmatpush1.bf16.msra.mxu0 0
    %1295 = vmatprep.subr.bf16.mxu0 0
    %1296 = vmatpush1.bf16.msra.mxu0 0
    %1297 = vmatprep.subr.bf16.mxu0 0
    %1298 = vmatpush1.bf16.msra.mxu0 0
    %1299 = vmatprep.subr.bf16.mxu0 0
    %1300 = vmatpush1.bf16.msra.mxu0 0
    %1301 = vmatprep.subr.bf16.mxu0 0
    %1302 = vmatpush1.bf16.msra.mxu0 0
    %1303 = vmatprep.mubr.bf16.mxu0 0
    %1304 = vmatmul.mubr.bf16.gmra.mrb[0].mxu0 %v821
    %v1305 = vpop.f32.mrb[0].mxu0
    %v1306 = vadd.f32 0.0, %v1305
    %v1307 = vpop.f32.mrb[0].mxu0
    %v1308 = vadd.f32 0.0, %v1307
    %v1309 = vpop.f32.mrb[0].mxu0
    %v1310 = vadd.f32 0.0, %v1309
    %v1311 = vpop.f32.mrb[0].mxu0
    %v1312 = vadd.f32 0.0, %v1311
    %1313 = vmatprep.mubr.bf16.mxu0 0
    %1314 = vmatmul.mubr.bf16.gmra.mrb[0].mxu0 %v822
    %v1315 = vpop.f32.mrb[0].mxu0
    %v1316 = vadd.f32 0.0, %v1315
    %v1317 = vpop.f32.mrb[0].mxu0
    %v1318 = vadd.f32 0.0, %v1317
    %v1319 = vpop.f32.mrb[0].mxu0
    %v1320 = vadd.f32 0.0, %v1319
    %v1321 = vpop.f32.mrb[0].mxu0
    %v1322 = vadd.f32 0.0, %v1321
    %1323 = vdwg.mxu0
    %1324 = vmatprep.subr.bf16.mxu0 %v1130
    %1325 = vmatpush1.bf16.msra.mxu0 %v1129
    %1326 = vmatprep.subr.bf16.mxu0 %v1139
    %1327 = vmatpush1.bf16.msra.mxu0 %v1138
    %1328 = vmatprep.subr.bf16.mxu0 %v1148
    %1329 = vmatpush1.bf16.msra.mxu0 %v1147
    %1330 = vmatprep.subr.bf16.mxu0 %v1157
    %1331 = vmatpush1.bf16.msra.mxu0 %v1156
    %1332 = vmatprep.subr.bf16.mxu0 %v1166
    %1333 = vmatpush1.bf16.msra.mxu0 %v1165
    %1334 = vmatprep.subr.bf16.mxu0 %v1175
    %1335 = vmatpush1.bf16.msra.mxu0 %v1174
    %1336 = vmatprep.subr.bf16.mxu0 %v1184
    %1337 = vmatpush1.bf16.msra.mxu0 %v1183
    %1338 = vmatprep.subr.bf16.mxu0 %v1193
    %1339 = vmatpush1.bf16.msra.mxu0 %v1192
    %1340 = vmatprep.subr.bf16.mxu0 0
    %1341 = vmatpush1.bf16.msra.mxu0 0
    %1342 = vmatprep.subr.bf16.mxu0 0
    %1343 = vmatpush1.bf16.msra.mxu0 0
    %1344 = vmatprep.subr.bf16.mxu0 0
    %1345 = vmatpush1.bf16.msra.mxu0 0
    %1346 = vmatprep.subr.bf16.mxu0 0
    %1347 = vmatpush1.bf16.msra.mxu0 0
    %1348 = vmatprep.subr.bf16.mxu0 0
    %1349 = vmatpush1.bf16.msra.mxu0 0
    %1350 = vmatprep.subr.bf16.mxu0 0
    %1351 = vmatpush1.bf16.msra.mxu0 0
    %1352 = vmatprep.subr.bf16.mxu0 0
    %1353 = vmatpush1.bf16.msra.mxu0 0
    %1354 = vmatprep.subr.bf16.mxu0 0
    %1355 = vmatpush1.bf16.msra.mxu0 0
    %1356 = vmatprep.mubr.bf16.mxu0 0
    %1357 = vmatmul.mubr.bf16.gmra.mrb[0].mxu0 %v821
    %v1358 = vpop.f32.mrb[0].mxu0
    %v1359 = vadd.f32 0.0, %v1358
    %v1360 = vpop.f32.mrb[0].mxu0
    %v1361 = vadd.f32 0.0, %v1360
    %v1362 = vpop.f32.mrb[0].mxu0
    %v1363 = vadd.f32 0.0, %v1362
    %v1364 = vpop.f32.mrb[0].mxu0
    %v1365 = vadd.f32 0.0, %v1364
    %1366 = vmatprep.mubr.bf16.mxu0 0
    %1367 = vmatmul.mubr.bf16.gmra.mrb[0].mxu0 %v822
    %v1368 = vpop.f32.mrb[0].mxu0
    %v1369 = vadd.f32 0.0, %v1368
    %v1370 = vpop.f32.mrb[0].mxu0
    %v1371 = vadd.f32 0.0, %v1370
    %v1372 = vpop.f32.mrb[0].mxu0
    %v1373 = vadd.f32 0.0, %v1372
    %v1374 = vpop.f32.mrb[0].mxu0
    %v1375 = vadd.f32 0.0, %v1374
    %1376 = vdwg.mxu0
    %1377 = vmatprep.subr.bf16.mxu0 %v1132
    %1378 = vmatpush1.bf16.msra.mxu0 %v1131
    %1379 = vmatprep.subr.bf16.mxu0 %v1141
    %1380 = vmatpush1.bf16.msra.mxu0 %v1140
    %1381 = vmatprep.subr.bf16.mxu0 %v1150
    %1382 = vmatpush1.bf16.msra.mxu0 %v1149
    %1383 = vmatprep.subr.bf16.mxu0 %v1159
    %1384 = vmatpush1.bf16.msra.mxu0 %v1158
    %1385 = vmatprep.subr.bf16.mxu0 %v1168
    %1386 = vmatpush1.bf16.msra.mxu0 %v1167
    %1387 = vmatprep.subr.bf16.mxu0 %v1177
    %1388 = vmatpush1.bf16.msra.mxu0 %v1176
    %1389 = vmatprep.subr.bf16.mxu0 %v1186
    %1390 = vmatpush1.bf16.msra.mxu0 %v1185
    %1391 = vmatprep.subr.bf16.mxu0 %v1195
    %1392 = vmatpush1.bf16.msra.mxu0 %v1194
    %1393 = vmatprep.subr.bf16.mxu0 0
    %1394 = vmatpush1.bf16.msra.mxu0 0
    %1395 = vmatprep.subr.bf16.mxu0 0
    %1396 = vmatpush1.bf16.msra.mxu0 0
    %1397 = vmatprep.subr.bf16.mxu0 0
    %1398 = vmatpush1.bf16.msra.mxu0 0
    %1399 = vmatprep.subr.bf16.mxu0 0
    %1400 = vmatpush1.bf16.msra.mxu0 0
    %1401 = vmatprep.subr.bf16.mxu0 0
    %1402 = vmatpush1.bf16.msra.mxu0 0
    %1403 = vmatprep.subr.bf16.mxu0 0
    %1404 = vmatpush1.bf16.msra.mxu0 0
    %1405 = vmatprep.subr.bf16.mxu0 0
    %1406 = vmatpush1.bf16.msra.mxu0 0
    %1407 = vmatprep.subr.bf16.mxu0 0
    %1408 = vmatpush1.bf16.msra.mxu0 0
    %1409 = vmatprep.mubr.bf16.mxu0 0
    %1410 = vmatmul.mubr.bf16.gmra.mrb[0].mxu0 %v821
    %v1411 = vpop.f32.mrb[0].mxu0
    %v1412 = vadd.f32 0.0, %v1411
    %v1413 = vpop.f32.mrb[0].mxu0
    %v1414 = vadd.f32 0.0, %v1413
    %v1415 = vpop.f32.mrb[0].mxu0
    %v1416 = vadd.f32 0.0, %v1415
    %v1417 = vpop.f32.mrb[0].mxu0
    %v1418 = vadd.f32 0.0, %v1417
    %1419 = vmatprep.mubr.bf16.mxu0 0
    %1420 = vmatmul.mubr.bf16.gmra.mrb[0].mxu0 %v822
    %v1421 = vpop.f32.mrb[0].mxu0
    %v1422 = vadd.f32 0.0, %v1421
    %v1423 = vpop.f32.mrb[0].mxu0
    %v1424 = vadd.f32 0.0, %v1423
    %v1425 = vpop.f32.mrb[0].mxu0
    %v1426 = vadd.f32 0.0, %v1425
    %v1427 = vpop.f32.mrb[0].mxu0
    %v1428 = vadd.f32 0.0, %v1427
    %1429 = vdwg.mxu0
    %1430 = vmatprep.subr.bf16.mxu0 %v1134
    %1431 = vmatpush1.bf16.msra.mxu0 %v1133
    %1432 = vmatprep.subr.bf16.mxu0 %v1143
    %1433 = vmatpush1.bf16.msra.mxu0 %v1142
    %1434 = vmatprep.subr.bf16.mxu0 %v1152
    %1435 = vmatpush1.bf16.msra.mxu0 %v1151
    %1436 = vmatprep.subr.bf16.mxu0 %v1161
    %1437 = vmatpush1.bf16.msra.mxu0 %v1160
    %1438 = vmatprep.subr.bf16.mxu0 %v1170
    %1439 = vmatpush1.bf16.msra.mxu0 %v1169
    %1440 = vmatprep.subr.bf16.mxu0 %v1179
    %1441 = vmatpush1.bf16.msra.mxu0 %v1178
    %1442 = vmatprep.subr.bf16.mxu0 %v1188
    %1443 = vmatpush1.bf16.msra.mxu0 %v1187
    %1444 = vmatprep.subr.bf16.mxu0 %v1197
    %1445 = vmatpush1.bf16.msra.mxu0 %v1196
    %1446 = vmatprep.subr.bf16.mxu0 0
    %1447 = vmatpush1.bf16.msra.mxu0 0
    %1448 = vmatprep.subr.bf16.mxu0 0
    %1449 = vmatpush1.bf16.msra.mxu0 0
    %1450 = vmatprep.subr.bf16.mxu0 0
    %1451 = vmatpush1.bf16.msra.mxu0 0
    %1452 = vmatprep.subr.bf16.mxu0 0
    %1453 = vmatpush1.bf16.msra.mxu0 0
    %1454 = vmatprep.subr.bf16.mxu0 0
    %1455 = vmatpush1.bf16.msra.mxu0 0
    %1456 = vmatprep.subr.bf16.mxu0 0
    %1457 = vmatpush1.bf16.msra.mxu0 0
    %1458 = vmatprep.subr.bf16.mxu0 0
    %1459 = vmatpush1.bf16.msra.mxu0 0
    %1460 = vmatprep.subr.bf16.mxu0 0
    %1461 = vmatpush1.bf16.msra.mxu0 0
    %1462 = vmatprep.mubr.bf16.mxu0 0
    %1463 = vmatmul.mubr.bf16.gmra.mrb[0].mxu0 %v821
    %v1464 = vpop.f32.mrb[0].mxu0
    %v1465 = vadd.f32 0.0, %v1464
    %v1466 = vpop.f32.mrb[0].mxu0
    %v1467 = vadd.f32 0.0, %v1466
    %v1468 = vpop.f32.mrb[0].mxu0
    %v1469 = vadd.f32 0.0, %v1468
    %v1470 = vpop.f32.mrb[0].mxu0
    %v1471 = vadd.f32 0.0, %v1470
    %1472 = vmatprep.mubr.bf16.mxu0 0
    %1473 = vmatmul.mubr.bf16.gmra.mrb[0].mxu0 %v822
    %v1474 = vpop.f32.mrb[0].mxu0
    %v1475 = vadd.f32 0.0, %v1474
    %v1476 = vpop.f32.mrb[0].mxu0
    %v1477 = vadd.f32 0.0, %v1476
    %v1478 = vpop.f32.mrb[0].mxu0
    %v1479 = vadd.f32 0.0, %v1478
    %v1480 = vpop.f32.mrb[0].mxu0
    %v1481 = vadd.f32 0.0, %v1480
    %1482 = vdwg.mxu0
    %1483 = vmatprep.subr.bf16.mxu0 0
    %1484 = vmatpush1.bf16.msra.mxu0 %v1135
    %1485 = vmatprep.subr.bf16.mxu0 0
    %1486 = vmatpush1.bf16.msra.mxu0 %v1144
    %1487 = vmatprep.subr.bf16.mxu0 0
    %1488 = vmatpush1.bf16.msra.mxu0 %v1153
    %1489 = vmatprep.subr.bf16.mxu0 0
    %1490 = vmatpush1.bf16.msra.mxu0 %v1162
    %1491 = vmatprep.subr.bf16.mxu0 0
    %1492 = vmatpush1.bf16.msra.mxu0 %v1171
    %1493 = vmatprep.subr.bf16.mxu0 0
    %1494 = vmatpush1.bf16.msra.mxu0 %v1180
    %1495 = vmatprep.subr.bf16.mxu0 0
    %1496 = vmatpush1.bf16.msra.mxu0 %v1189
    %1497 = vmatprep.subr.bf16.mxu0 0
    %1498 = vmatpush1.bf16.msra.mxu0 %v1198
    %1499 = vmatprep.subr.bf16.mxu0 0
    %1500 = vmatpush1.bf16.msra.mxu0 0
    %1501 = vmatprep.subr.bf16.mxu0 0
    %1502 = vmatpush1.bf16.msra.mxu0 0
    %1503 = vmatprep.subr.bf16.mxu0 0
    %1504 = vmatpush1.bf16.msra.mxu0 0
    %1505 = vmatprep.subr.bf16.mxu0 0
    %1506 = vmatpush1.bf16.msra.mxu0 0
    %1507 = vmatprep.subr.bf16.mxu0 0
    %1508 = vmatpush1.bf16.msra.mxu0 0
    %1509 = vmatprep.subr.bf16.mxu0 0
    %1510 = vmatpush1.bf16.msra.mxu0 0
    %1511 = vmatprep.subr.bf16.mxu0 0
    %1512 = vmatpush1.bf16.msra.mxu0 0
    %1513 = vmatprep.subr.bf16.mxu0 0
    %1514 = vmatpush1.bf16.msra.mxu0 0
    %1515 = vmatprep.mubr.bf16.mxu0 0
    %1516 = vmatmul.mubr.bf16.gmra.mrb[0].mxu0 %v821
    %v1517 = vpop.f32.mrb[0].mxu0
    %v1518 = vadd.f32 0.0, %v1517
    %v1519 = vpop.f32.mrb[0].mxu0
    %v1520 = vpop.f32.mrb[0].mxu0
    %v1521 = vadd.f32 0.0, %v1520
    %v1522 = vpop.f32.mrb[0].mxu0
    %1523 = vmatprep.mubr.bf16.mxu0 0
    %1524 = vmatmul.mubr.bf16.gmra.mrb[0].mxu0 %v822
    %v1525 = vpop.f32.mrb[0].mxu0
    %v1526 = vadd.f32 0.0, %v1525
    %v1527 = vpop.f32.mrb[0].mxu0
    %v1528 = vpop.f32.mrb[0].mxu0
    %v1529 = vadd.f32 0.0, %v1528
    %v1530 = vpop.f32.mrb[0].mxu0
    %1531 = vdwg.mxu0
    %v1532 = vpack.c.bf16 %v1310, %v1306
    %v1533 = vpack.c.bf16 %v1312, %v1308
    %v1534 = vpack.c.bf16 %v1363, %v1359
    %v1535 = vpack.c.bf16 %v1365, %v1361
    %v1536 = vpack.c.bf16 %v1416, %v1412
    %v1537 = vpack.c.bf16 %v1418, %v1414
    %v1538 = vpack.c.bf16 %v1469, %v1465
    %v1539 = vpack.c.bf16 %v1471, %v1467
    %v1540 = vpack.c.bf16 %v1521, %v1518
    %v1541 = vpack.c.bf16 %v1320, %v1316
    %v1542 = vpack.c.bf16 %v1322, %v1318
    %v1543 = vpack.c.bf16 %v1373, %v1369
    %v1544 = vpack.c.bf16 %v1375, %v1371
    %v1545 = vpack.c.bf16 %v1426, %v1422
    %v1546 = vpack.c.bf16 %v1428, %v1424
    %v1547 = vpack.c.bf16 %v1479, %v1475
    %v1548 = vpack.c.bf16 %v1481, %v1477
    %v1549 = vpack.c.bf16 %v1529, %v1526
    %v1550 = vld [vmem:[#allocation10] sm:$0xf]
    %v1551 = vld [vmem:[#allocation10 + $0x4] sm:$0xf]
    %v1552 = vld [vmem:[#allocation10 + $0x8] sm:$0xf]
    %v1553 = vld [vmem:[#allocation10 + $0xc] sm:$0xf]
    %s1554 = scalar_lea.vmem [#allocation10], 16
    %v1555 = vld [vmem:[%s1554] sm:$0xf]
    %v1556 = vld [vmem:[%s1554 + $0x4] sm:$0xf]
    %v1557 = vld [vmem:[%s1554 + $0x8] sm:$0xf]
    %v1558 = vld [vmem:[%s1554 + $0xc] sm:$0xf]
    %v1563 = vunpack.c.l.b16 %v1555
    %v1564 = vunpack.c.l.b16 %v1556
    %v1565 = vunpack.c.l.b16 %v1557
    %v1566 = vunpack.c.l.b16 %v1558
    %v1567 = vpack.c.b16 %v1564, %v1563
    %v1568 = vpack.c.b16 %v1566, %v1565
    %vm1569 = vcmask 261120
    %v1571 = vsel %vm1569, %v1567, 0
    %v1574 = vsel %vm1569, %v1568, 0
    %1576 = vmatprep.subr.bf16.mxu0 0
    %1577 = vmatpush1.bf16.msra.mxu0 %v1533
    %1578 = vmatprep.subr.bf16.mxu0 0
    %1579 = vmatpush1.bf16.msra.mxu0 %v1542
    %1580 = vmatprep.subr.bf16.mxu0 0
    %1581 = vmatpush1.bf16.msra.mxu0 0
    %1582 = vmatprep.subr.bf16.mxu0 0
    %1583 = vmatpush1.bf16.msra.mxu0 0
    %1584 = vmatprep.subr.bf16.mxu0 0
    %1585 = vmatpush1.bf16.msra.mxu0 0
    %1586 = vmatprep.subr.bf16.mxu0 0
    %1587 = vmatpush1.bf16.msra.mxu0 0
    %1588 = vmatprep.subr.bf16.mxu0 0
    %1589 = vmatpush1.bf16.msra.mxu0 0
    %1590 = vmatprep.subr.bf16.mxu0 0
    %1591 = vmatpush1.bf16.msra.mxu0 0
    %1592 = vmatprep.subr.bf16.mxu0 0
    %1593 = vmatpush1.bf16.msra.mxu0 0
    %1594 = vmatprep.subr.bf16.mxu0 0
    %1595 = vmatpush1.bf16.msra.mxu0 0
    %1596 = vmatprep.subr.bf16.mxu0 0
    %1597 = vmatpush1.bf16.msra.mxu0 0
    %1598 = vmatprep.subr.bf16.mxu0 0
    %1599 = vmatpush1.bf16.msra.mxu0 0
    %1600 = vmatprep.subr.bf16.mxu0 0
    %1601 = vmatpush1.bf16.msra.mxu0 0
    %1602 = vmatprep.subr.bf16.mxu0 0
    %1603 = vmatpush1.bf16.msra.mxu0 0
    %1604 = vmatprep.subr.bf16.mxu0 0
    %1605 = vmatpush1.bf16.msra.mxu0 0
    %1606 = vmatprep.subr.bf16.mxu0 0
    %1607 = vmatpush1.bf16.msra.mxu0 0
    %1608 = vmatprep.mubr.bf16.mxu0 0
    %1609 = vmatmul.mubr.bf16.gmra.mrb[0].mxu0 %v1571
    %v1610 = vpop.f32.mrb[0].mxu0
    %v1611 = vadd.f32 0.0, %v1610
    %v1612 = vpop.f32.mrb[0].mxu0
    %v1613 = vpop.f32.mrb[0].mxu0
    %v1614 = vadd.f32 0.0, %v1613
    %v1615 = vpop.f32.mrb[0].mxu0
    %1616 = vmatprep.mubr.bf16.mxu0 0
    %1617 = vmatmul.mubr.bf16.gmra.mrb[0].mxu0 %v1574
    %v1618 = vpop.f32.mrb[0].mxu0
    %v1619 = vadd.f32 0.0, %v1618
    %v1620 = vpop.f32.mrb[0].mxu0
    %v1621 = vpop.f32.mrb[0].mxu0
    %v1622 = vadd.f32 0.0, %v1621
    %v1623 = vpop.f32.mrb[0].mxu0
    %1624 = vdwg.mxu0
    %s1625 = scalar_lea.vmem [#allocation10], 32
    %v1626 = vld [vmem:[%s1625] sm:$0xf]
    %v1627 = vld [vmem:[%s1625 + $0x4] sm:$0xf]
    %v1628 = vld [vmem:[%s1625 + $0x8] sm:$0xf]
    %v1629 = vld [vmem:[%s1625 + $0xc] sm:$0xf]
    %s1630 = scalar_lea.vmem [#allocation10], 48
    %v1631 = vld [vmem:[%s1630] sm:$0xf]
    %v1632 = vld [vmem:[%s1630 + $0x4] sm:$0xf]
    %v1633 = vld [vmem:[%s1630 + $0x8] sm:$0xf]
    %v1634 = vld [vmem:[%s1630 + $0xc] sm:$0xf]
    %v1639 = vunpack.c.l.b16 %v1631
    %v1640 = vunpack.c.l.b16 %v1632
    %v1641 = vunpack.c.l.b16 %v1633
    %v1642 = vunpack.c.l.b16 %v1634
    %v1643 = vpack.c.b16 %v1640, %v1639
    %v1644 = vpack.c.b16 %v1642, %v1641
    %v1646 = vsel %vm1569, %v1643, 0
    %v1649 = vsel %vm1569, %v1644, 0
    %1651 = vmatprep.subr.bf16.mxu0 0
    %1652 = vmatpush1.bf16.msra.mxu0 %v1535
    %1653 = vmatprep.subr.bf16.mxu0 0
    %1654 = vmatpush1.bf16.msra.mxu0 %v1544
    %1655 = vmatprep.subr.bf16.mxu0 0
    %1656 = vmatpush1.bf16.msra.mxu0 0
    %1657 = vmatprep.subr.bf16.mxu0 0
    %1658 = vmatpush1.bf16.msra.mxu0 0
    %1659 = vmatprep.subr.bf16.mxu0 0
    %1660 = vmatpush1.bf16.msra.mxu0 0
    %1661 = vmatprep.subr.bf16.mxu0 0
    %1662 = vmatpush1.bf16.msra.mxu0 0
    %1663 = vmatprep.subr.bf16.mxu0 0
    %1664 = vmatpush1.bf16.msra.mxu0 0
    %1665 = vmatprep.subr.bf16.mxu0 0
    %1666 = vmatpush1.bf16.msra.mxu0 0
    %1667 = vmatprep.subr.bf16.mxu0 0
    %1668 = vmatpush1.bf16.msra.mxu0 0
    %1669 = vmatprep.subr.bf16.mxu0 0
    %1670 = vmatpush1.bf16.msra.mxu0 0
    %1671 = vmatprep.subr.bf16.mxu0 0
    %1672 = vmatpush1.bf16.msra.mxu0 0
    %1673 = vmatprep.subr.bf16.mxu0 0
    %1674 = vmatpush1.bf16.msra.mxu0 0
    %1675 = vmatprep.subr.bf16.mxu0 0
    %1676 = vmatpush1.bf16.msra.mxu0 0
    %1677 = vmatprep.subr.bf16.mxu0 0
    %1678 = vmatpush1.bf16.msra.mxu0 0
    %1679 = vmatprep.subr.bf16.mxu0 0
    %1680 = vmatpush1.bf16.msra.mxu0 0
    %1681 = vmatprep.subr.bf16.mxu0 0
    %1682 = vmatpush1.bf16.msra.mxu0 0
    %1683 = vmatprep.mubr.bf16.mxu0 0
    %1684 = vmatmul.mubr.bf16.gmra.mrb[0].mxu0 %v1646
    %v1685 = vpop.f32.mrb[0].mxu0
    %v1686 = vadd.f32 0.0, %v1685
    %v1687 = vpop.f32.mrb[0].mxu0
    %v1688 = vpop.f32.mrb[0].mxu0
    %v1689 = vadd.f32 0.0, %v1688
    %v1690 = vpop.f32.mrb[0].mxu0
    %1691 = vmatprep.mubr.bf16.mxu0 0
    %1692 = vmatmul.mubr.bf16.gmra.mrb[0].mxu0 %v1649
    %v1693 = vpop.f32.mrb[0].mxu0
    %v1694 = vadd.f32 0.0, %v1693
    %v1695 = vpop.f32.mrb[0].mxu0
    %v1696 = vpop.f32.mrb[0].mxu0
    %v1697 = vadd.f32 0.0, %v1696
    %v1698 = vpop.f32.mrb[0].mxu0
    %1699 = vdwg.mxu0
    %s1700 = scalar_lea.vmem [#allocation10], 64
    %v1701 = vld [vmem:[%s1700] sm:$0xf]
    %v1702 = vld [vmem:[%s1700 + $0x4] sm:$0xf]
    %v1703 = vld [vmem:[%s1700 + $0x8] sm:$0xf]
    %v1704 = vld [vmem:[%s1700 + $0xc] sm:$0xf]
    %s1705 = scalar_lea.vmem [#allocation10], 80
    %v1706 = vld [vmem:[%s1705] sm:$0xf]
    %v1707 = vld [vmem:[%s1705 + $0x4] sm:$0xf]
    %v1708 = vld [vmem:[%s1705 + $0x8] sm:$0xf]
    %v1709 = vld [vmem:[%s1705 + $0xc] sm:$0xf]
    %v1714 = vunpack.c.l.b16 %v1706
    %v1715 = vunpack.c.l.b16 %v1707
    %v1716 = vunpack.c.l.b16 %v1708
    %v1717 = vunpack.c.l.b16 %v1709
    %v1718 = vpack.c.b16 %v1715, %v1714
    %v1719 = vpack.c.b16 %v1717, %v1716
    %v1721 = vsel %vm1569, %v1718, 0
    %v1724 = vsel %vm1569, %v1719, 0
    %1726 = vmatprep.subr.bf16.mxu0 0
    %1727 = vmatpush1.bf16.msra.mxu0 %v1537
    %1728 = vmatprep.subr.bf16.mxu0 0
    %1729 = vmatpush1.bf16.msra.mxu0 %v1546
    %1730 = vmatprep.subr.bf16.mxu0 0
    %1731 = vmatpush1.bf16.msra.mxu0 0
    %1732 = vmatprep.subr.bf16.mxu0 0
    %1733 = vmatpush1.bf16.msra.mxu0 0
    %1734 = vmatprep.subr.bf16.mxu0 0
    %1735 = vmatpush1.bf16.msra.mxu0 0
    %1736 = vmatprep.subr.bf16.mxu0 0
    %1737 = vmatpush1.bf16.msra.mxu0 0
    %1738 = vmatprep.subr.bf16.mxu0 0
    %1739 = vmatpush1.bf16.msra.mxu0 0
    %1740 = vmatprep.subr.bf16.mxu0 0
    %1741 = vmatpush1.bf16.msra.mxu0 0
    %1742 = vmatprep.subr.bf16.mxu0 0
    %1743 = vmatpush1.bf16.msra.mxu0 0
    %1744 = vmatprep.subr.bf16.mxu0 0
    %1745 = vmatpush1.bf16.msra.mxu0 0
    %1746 = vmatprep.subr.bf16.mxu0 0
    %1747 = vmatpush1.bf16.msra.mxu0 0
    %1748 = vmatprep.subr.bf16.mxu0 0
    %1749 = vmatpush1.bf16.msra.mxu0 0
    %1750 = vmatprep.subr.bf16.mxu0 0
    %1751 = vmatpush1.bf16.msra.mxu0 0
    %1752 = vmatprep.subr.bf16.mxu0 0
    %1753 = vmatpush1.bf16.msra.mxu0 0
    %1754 = vmatprep.subr.bf16.mxu0 0
    %1755 = vmatpush1.bf16.msra.mxu0 0
    %1756 = vmatprep.subr.bf16.mxu0 0
    %1757 = vmatpush1.bf16.msra.mxu0 0
    %1758 = vmatprep.mubr.bf16.mxu0 0
    %1759 = vmatmul.mubr.bf16.gmra.mrb[0].mxu0 %v1721
    %v1760 = vpop.f32.mrb[0].mxu0
    %v1761 = vadd.f32 0.0, %v1760
    %v1762 = vpop.f32.mrb[0].mxu0
    %v1763 = vpop.f32.mrb[0].mxu0
    %v1764 = vadd.f32 0.0, %v1763
    %v1765 = vpop.f32.mrb[0].mxu0
    %1766 = vmatprep.mubr.bf16.mxu0 0
    %1767 = vmatmul.mubr.bf16.gmra.mrb[0].mxu0 %v1724
    %v1768 = vpop.f32.mrb[0].mxu0
    %v1769 = vadd.f32 0.0, %v1768
    %v1770 = vpop.f32.mrb[0].mxu0
    %v1771 = vpop.f32.mrb[0].mxu0
    %v1772 = vadd.f32 0.0, %v1771
    %v1773 = vpop.f32.mrb[0].mxu0
    %1774 = vdwg.mxu0
    %s1775 = scalar_lea.vmem [#allocation10], 96
    %v1776 = vld [vmem:[%s1775] sm:$0xf]
    %v1777 = vld [vmem:[%s1775 + $0x4] sm:$0xf]
    %v1778 = vld [vmem:[%s1775 + $0x8] sm:$0xf]
    %v1779 = vld [vmem:[%s1775 + $0xc] sm:$0xf]
    %s1780 = scalar_lea.vmem [#allocation10], 112
    %v1781 = vld [vmem:[%s1780] sm:$0xf]
    %v1782 = vld [vmem:[%s1780 + $0x4] sm:$0xf]
    %v1783 = vld [vmem:[%s1780 + $0x8] sm:$0xf]
    %v1784 = vld [vmem:[%s1780 + $0xc] sm:$0xf]
    %v1789 = vunpack.c.l.b16 %v1781
    %v1790 = vunpack.c.l.b16 %v1782
    %v1791 = vunpack.c.l.b16 %v1783
    %v1792 = vunpack.c.l.b16 %v1784
    %v1793 = vpack.c.b16 %v1790, %v1789
    %v1794 = vpack.c.b16 %v1792, %v1791
    %v1796 = vsel %vm1569, %v1793, 0
    %v1799 = vsel %vm1569, %v1794, 0
    %1801 = vmatprep.subr.bf16.mxu0 0
    %1802 = vmatpush1.bf16.msra.mxu0 %v1539
    %1803 = vmatprep.subr.bf16.mxu0 0
    %1804 = vmatpush1.bf16.msra.mxu0 %v1548
    %1805 = vmatprep.subr.bf16.mxu0 0
    %1806 = vmatpush1.bf16.msra.mxu0 0
    %1807 = vmatprep.subr.bf16.mxu0 0
    %1808 = vmatpush1.bf16.msra.mxu0 0
    %1809 = vmatprep.subr.bf16.mxu0 0
    %1810 = vmatpush1.bf16.msra.mxu0 0
    %1811 = vmatprep.subr.bf16.mxu0 0
    %1812 = vmatpush1.bf16.msra.mxu0 0
    %1813 = vmatprep.subr.bf16.mxu0 0
    %1814 = vmatpush1.bf16.msra.mxu0 0
    %1815 = vmatprep.subr.bf16.mxu0 0
    %1816 = vmatpush1.bf16.msra.mxu0 0
    %1817 = vmatprep.subr.bf16.mxu0 0
    %1818 = vmatpush1.bf16.msra.mxu0 0
    %1819 = vmatprep.subr.bf16.mxu0 0
    %1820 = vmatpush1.bf16.msra.mxu0 0
    %1821 = vmatprep.subr.bf16.mxu0 0
    %1822 = vmatpush1.bf16.msra.mxu0 0
    %1823 = vmatprep.subr.bf16.mxu0 0
    %1824 = vmatpush1.bf16.msra.mxu0 0
    %1825 = vmatprep.subr.bf16.mxu0 0
    %1826 = vmatpush1.bf16.msra.mxu0 0
    %1827 = vmatprep.subr.bf16.mxu0 0
    %1828 = vmatpush1.bf16.msra.mxu0 0
    %1829 = vmatprep.subr.bf16.mxu0 0
    %1830 = vmatpush1.bf16.msra.mxu0 0
    %1831 = vmatprep.subr.bf16.mxu0 0
    %1832 = vmatpush1.bf16.msra.mxu0 0
    %1833 = vmatprep.mubr.bf16.mxu0 0
    %1834 = vmatmul.mubr.bf16.gmra.mrb[0].mxu0 %v1796
    %v1835 = vpop.f32.mrb[0].mxu0
    %v1836 = vadd.f32 0.0, %v1835
    %v1837 = vpop.f32.mrb[0].mxu0
    %v1838 = vpop.f32.mrb[0].mxu0
    %v1839 = vadd.f32 0.0, %v1838
    %v1840 = vpop.f32.mrb[0].mxu0
    %1841 = vmatprep.mubr.bf16.mxu0 0
    %1842 = vmatmul.mubr.bf16.gmra.mrb[0].mxu0 %v1799
    %v1843 = vpop.f32.mrb[0].mxu0
    %v1844 = vadd.f32 0.0, %v1843
    %v1845 = vpop.f32.mrb[0].mxu0
    %v1846 = vpop.f32.mrb[0].mxu0
    %v1847 = vadd.f32 0.0, %v1846
    %v1848 = vpop.f32.mrb[0].mxu0
    %1849 = vdwg.mxu0
    %s1850 = scalar_lea.vmem [#allocation10], 128
    %v1851 = vld [vmem:[%s1850] sm:$0xf]
    %v1852 = vld [vmem:[%s1850 + $0x4] sm:$0xf]
    %v1853 = vld [vmem:[%s1850 + $0x8] sm:$0xf]
    %v1854 = vld [vmem:[%s1850 + $0xc] sm:$0xf]
    %v1859 = vunpack.c.l.b16 %v1851
    %v1860 = vunpack.c.l.b16 %v1852
    %v1861 = vunpack.c.l.b16 %v1853
    %v1862 = vunpack.c.l.b16 %v1854
    %v1863 = vpack.c.b16 %v1860, %v1859
    %v1864 = vpack.c.b16 %v1862, %v1861
    %v1866 = vsel %vm1569, %v1863, 0
    %v1869 = vsel %vm1569, %v1864, 0
    %1871 = vmatprep.subr.bf16.mxu0 0
    %1872 = vmatpush1.bf16.msra.mxu0 %v1540
    %1873 = vmatprep.subr.bf16.mxu0 0
    %1874 = vmatpush1.bf16.msra.mxu0 %v1549
    %1875 = vmatprep.subr.bf16.mxu0 0
    %1876 = vmatpush1.bf16.msra.mxu0 0
    %1877 = vmatprep.subr.bf16.mxu0 0
    %1878 = vmatpush1.bf16.msra.mxu0 0
    %1879 = vmatprep.subr.bf16.mxu0 0
    %1880 = vmatpush1.bf16.msra.mxu0 0
    %1881 = vmatprep.subr.bf16.mxu0 0
    %1882 = vmatpush1.bf16.msra.mxu0 0
    %1883 = vmatprep.subr.bf16.mxu0 0
    %1884 = vmatpush1.bf16.msra.mxu0 0
    %1885 = vmatprep.subr.bf16.mxu0 0
    %1886 = vmatpush1.bf16.msra.mxu0 0
    %1887 = vmatprep.subr.bf16.mxu0 0
    %1888 = vmatpush1.bf16.msra.mxu0 0
    %1889 = vmatprep.subr.bf16.mxu0 0
    %1890 = vmatpush1.bf16.msra.mxu0 0
    %1891 = vmatprep.subr.bf16.mxu0 0
    %1892 = vmatpush1.bf16.msra.mxu0 0
    %1893 = vmatprep.subr.bf16.mxu0 0
    %1894 = vmatpush1.bf16.msra.mxu0 0
    %1895 = vmatprep.subr.bf16.mxu0 0
    %1896 = vmatpush1.bf16.msra.mxu0 0
    %1897 = vmatprep.subr.bf16.mxu0 0
    %1898 = vmatpush1.bf16.msra.mxu0 0
    %1899 = vmatprep.subr.bf16.mxu0 0
    %1900 = vmatpush1.bf16.msra.mxu0 0
    %1901 = vmatprep.subr.bf16.mxu0 0
    %1902 = vmatpush1.bf16.msra.mxu0 0
    %1903 = vmatprep.mubr.bf16.mxu0 0
    %1904 = vmatmul.mubr.bf16.gmra.mrb[0].mxu0 %v1866
    %v1905 = vpop.f32.mrb[0].mxu0
    %v1906 = vadd.f32 0.0, %v1905
    %v1907 = vpop.f32.mrb[0].mxu0
    %v1908 = vpop.f32.mrb[0].mxu0
    %v1909 = vadd.f32 0.0, %v1908
    %v1910 = vpop.f32.mrb[0].mxu0
    %1911 = vmatprep.mubr.bf16.mxu0 0
    %1912 = vmatmul.mubr.bf16.gmra.mrb[0].mxu0 %v1869
    %v1913 = vpop.f32.mrb[0].mxu0
    %v1914 = vadd.f32 0.0, %v1913
    %v1915 = vpop.f32.mrb[0].mxu0
    %v1916 = vpop.f32.mrb[0].mxu0
    %v1917 = vadd.f32 0.0, %v1916
    %v1918 = vpop.f32.mrb[0].mxu0
    %1919 = vdwg.mxu0
    %v1924 = vunpack.c.l.b16 %v1550
    %v1925 = vunpack.c.l.b16 %v1551
    %v1926 = vunpack.c.l.b16 %v1552
    %v1927 = vunpack.c.l.b16 %v1553
    %v1928 = vpack.c.b16 %v1925, %v1924
    %v1929 = vpack.c.b16 %v1927, %v1926
    %v1931 = vsel %vm1569, %v1928, 0
    %v1934 = vsel %vm1569, %v1929, 0
    %1936 = vmatprep.subr.bf16.mxu0 0
    %1937 = vmatpush1.bf16.msra.mxu0 %v1532
    %1938 = vmatprep.subr.bf16.mxu0 0
    %1939 = vmatpush1.bf16.msra.mxu0 %v1541
    %1940 = vmatprep.subr.bf16.mxu0 0
    %1941 = vmatpush1.bf16.msra.mxu0 0
    %1942 = vmatprep.subr.bf16.mxu0 0
    %1943 = vmatpush1.bf16.msra.mxu0 0
    %1944 = vmatprep.subr.bf16.mxu0 0
    %1945 = vmatpush1.bf16.msra.mxu0 0
    %1946 = vmatprep.subr.bf16.mxu0 0
    %1947 = vmatpush1.bf16.msra.mxu0 0
    %1948 = vmatprep.subr.bf16.mxu0 0
    %1949 = vmatpush1.bf16.msra.mxu0 0
    %1950 = vmatprep.subr.bf16.mxu0 0
    %1951 = vmatpush1.bf16.msra.mxu0 0
    %1952 = vmatprep.subr.bf16.mxu0 0
    %1953 = vmatpush1.bf16.msra.mxu0 0
    %1954 = vmatprep.subr.bf16.mxu0 0
    %1955 = vmatpush1.bf16.msra.mxu0 0
    %1956 = vmatprep.subr.bf16.mxu0 0
    %1957 = vmatpush1.bf16.msra.mxu0 0
    %1958 = vmatprep.subr.bf16.mxu0 0
    %1959 = vmatpush1.bf16.msra.mxu0 0
    %1960 = vmatprep.subr.bf16.mxu0 0
    %1961 = vmatpush1.bf16.msra.mxu0 0
    %1962 = vmatprep.subr.bf16.mxu0 0
    %1963 = vmatpush1.bf16.msra.mxu0 0
    %1964 = vmatprep.subr.bf16.mxu0 0
    %1965 = vmatpush1.bf16.msra.mxu0 0
    %1966 = vmatprep.subr.bf16.mxu0 0
    %1967 = vmatpush1.bf16.msra.mxu0 0
    %1968 = vmatprep.mubr.bf16.mxu0 0
    %1969 = vmatmul.mubr.bf16.gmra.mrb[0].mxu0 %v1931
    %v1970 = vpop.f32.mrb[0].mxu0
    %v1971 = vadd.f32 %v1611, %v1970
    %v1972 = vpop.f32.mrb[0].mxu0
    %v1973 = vpop.f32.mrb[0].mxu0
    %v1974 = vadd.f32 %v1614, %v1973
    %v1975 = vpop.f32.mrb[0].mxu0
    %1976 = vmatprep.mubr.bf16.mxu0 0
    %1977 = vmatmul.mubr.bf16.gmra.mrb[0].mxu0 %v1934
    %v1978 = vpop.f32.mrb[0].mxu0
    %v1979 = vadd.f32 %v1619, %v1978
    %v1980 = vpop.f32.mrb[0].mxu0
    %v1981 = vpop.f32.mrb[0].mxu0
    %v1982 = vadd.f32 %v1622, %v1981
    %v1983 = vpop.f32.mrb[0].mxu0
    %1984 = vdwg.mxu0
    %v1989 = vunpack.c.l.b16 %v1626
    %v1990 = vunpack.c.l.b16 %v1627
    %v1991 = vunpack.c.l.b16 %v1628
    %v1992 = vunpack.c.l.b16 %v1629
    %v1993 = vpack.c.b16 %v1990, %v1989
    %v1994 = vpack.c.b16 %v1992, %v1991
    %v1996 = vsel %vm1569, %v1993, 0
    %v1999 = vsel %vm1569, %v1994, 0
    %2001 = vmatprep.subr.bf16.mxu0 0
    %2002 = vmatpush1.bf16.msra.mxu0 %v1534
    %2003 = vmatprep.subr.bf16.mxu0 0
    %2004 = vmatpush1.bf16.msra.mxu0 %v1543
    %2005 = vmatprep.subr.bf16.mxu0 0
    %2006 = vmatpush1.bf16.msra.mxu0 0
    %2007 = vmatprep.subr.bf16.mxu0 0
    %2008 = vmatpush1.bf16.msra.mxu0 0
    %2009 = vmatprep.subr.bf16.mxu0 0
    %2010 = vmatpush1.bf16.msra.mxu0 0
    %2011 = vmatprep.subr.bf16.mxu0 0
    %2012 = vmatpush1.bf16.msra.mxu0 0
    %2013 = vmatprep.subr.bf16.mxu0 0
    %2014 = vmatpush1.bf16.msra.mxu0 0
    %2015 = vmatprep.subr.bf16.mxu0 0
    %2016 = vmatpush1.bf16.msra.mxu0 0
    %2017 = vmatprep.subr.bf16.mxu0 0
    %2018 = vmatpush1.bf16.msra.mxu0 0
    %2019 = vmatprep.subr.bf16.mxu0 0
    %2020 = vmatpush1.bf16.msra.mxu0 0
    %2021 = vmatprep.subr.bf16.mxu0 0
    %2022 = vmatpush1.bf16.msra.mxu0 0
    %2023 = vmatprep.subr.bf16.mxu0 0
    %2024 = vmatpush1.bf16.msra.mxu0 0
    %2025 = vmatprep.subr.bf16.mxu0 0
    %2026 = vmatpush1.bf16.msra.mxu0 0
    %2027 = vmatprep.subr.bf16.mxu0 0
    %2028 = vmatpush1.bf16.msra.mxu0 0
    %2029 = vmatprep.subr.bf16.mxu0 0
    %2030 = vmatpush1.bf16.msra.mxu0 0
    %2031 = vmatprep.subr.bf16.mxu0 0
    %2032 = vmatpush1.bf16.msra.mxu0 0
    %2033 = vmatprep.mubr.bf16.mxu0 0
    %2034 = vmatmul.mubr.bf16.gmra.mrb[0].mxu0 %v1996
    %v2035 = vpop.f32.mrb[0].mxu0
    %v2036 = vadd.f32 %v1686, %v2035
    %v2037 = vpop.f32.mrb[0].mxu0
    %v2038 = vpop.f32.mrb[0].mxu0
    %v2039 = vadd.f32 %v1689, %v2038
    %v2040 = vpop.f32.mrb[0].mxu0
    %2041 = vmatprep.mubr.bf16.mxu0 0
    %2042 = vmatmul.mubr.bf16.gmra.mrb[0].mxu0 %v1999
    %v2043 = vpop.f32.mrb[0].mxu0
    %v2044 = vadd.f32 %v1694, %v2043
    %v2045 = vpop.f32.mrb[0].mxu0
    %v2046 = vpop.f32.mrb[0].mxu0
    %v2047 = vadd.f32 %v1697, %v2046
    %v2048 = vpop.f32.mrb[0].mxu0
    %2049 = vdwg.mxu0
    %v2050 = vadd.f32 %v1971, %v2036
    %v2051 = vadd.f32 %v1974, %v2039
    %v2052 = vadd.f32 %v1979, %v2044
    %v2053 = vadd.f32 %v1982, %v2047
    %v2058 = vunpack.c.l.b16 %v1701
    %v2059 = vunpack.c.l.b16 %v1702
    %v2060 = vunpack.c.l.b16 %v1703
    %v2061 = vunpack.c.l.b16 %v1704
    %v2062 = vpack.c.b16 %v2059, %v2058
    %v2063 = vpack.c.b16 %v2061, %v2060
    %v2065 = vsel %vm1569, %v2062, 0
    %v2068 = vsel %vm1569, %v2063, 0
    %2070 = vmatprep.subr.bf16.mxu0 0
    %2071 = vmatpush1.bf16.msra.mxu0 %v1536
    %2072 = vmatprep.subr.bf16.mxu0 0
    %2073 = vmatpush1.bf16.msra.mxu0 %v1545
    %2074 = vmatprep.subr.bf16.mxu0 0
    %2075 = vmatpush1.bf16.msra.mxu0 0
    %2076 = vmatprep.subr.bf16.mxu0 0
    %2077 = vmatpush1.bf16.msra.mxu0 0
    %2078 = vmatprep.subr.bf16.mxu0 0
    %2079 = vmatpush1.bf16.msra.mxu0 0
    %2080 = vmatprep.subr.bf16.mxu0 0
    %2081 = vmatpush1.bf16.msra.mxu0 0
    %2082 = vmatprep.subr.bf16.mxu0 0
    %2083 = vmatpush1.bf16.msra.mxu0 0
    %2084 = vmatprep.subr.bf16.mxu0 0
    %2085 = vmatpush1.bf16.msra.mxu0 0
    %2086 = vmatprep.subr.bf16.mxu0 0
    %2087 = vmatpush1.bf16.msra.mxu0 0
    %2088 = vmatprep.subr.bf16.mxu0 0
    %2089 = vmatpush1.bf16.msra.mxu0 0
    %2090 = vmatprep.subr.bf16.mxu0 0
    %2091 = vmatpush1.bf16.msra.mxu0 0
    %2092 = vmatprep.subr.bf16.mxu0 0
    %2093 = vmatpush1.bf16.msra.mxu0 0
    %2094 = vmatprep.subr.bf16.mxu0 0
    %2095 = vmatpush1.bf16.msra.mxu0 0
    %2096 = vmatprep.subr.bf16.mxu0 0
    %2097 = vmatpush1.bf16.msra.mxu0 0
    %2098 = vmatprep.subr.bf16.mxu0 0
    %2099 = vmatpush1.bf16.msra.mxu0 0
    %2100 = vmatprep.subr.bf16.mxu0 0
    %2101 = vmatpush1.bf16.msra.mxu0 0
    %2102 = vmatprep.mubr.bf16.mxu0 0
    %2103 = vmatmul.mubr.bf16.gmra.mrb[0].mxu0 %v2065
    %v2104 = vpop.f32.mrb[0].mxu0
    %v2105 = vadd.f32 %v1761, %v2104
    %v2106 = vpop.f32.mrb[0].mxu0
    %v2107 = vpop.f32.mrb[0].mxu0
    %v2108 = vadd.f32 %v1764, %v2107
    %v2109 = vpop.f32.mrb[0].mxu0
    %2110 = vmatprep.mubr.bf16.mxu0 0
    %2111 = vmatmul.mubr.bf16.gmra.mrb[0].mxu0 %v2068
    %v2112 = vpop.f32.mrb[0].mxu0
    %v2113 = vadd.f32 %v1769, %v2112
    %v2114 = vpop.f32.mrb[0].mxu0
    %v2115 = vpop.f32.mrb[0].mxu0
    %v2116 = vadd.f32 %v1772, %v2115
    %v2117 = vpop.f32.mrb[0].mxu0
    %2118 = vdwg.mxu0
    %v2123 = vunpack.c.l.b16 %v1776
    %v2124 = vunpack.c.l.b16 %v1777
    %v2125 = vunpack.c.l.b16 %v1778
    %v2126 = vunpack.c.l.b16 %v1779
    %v2127 = vpack.c.b16 %v2124, %v2123
    %v2128 = vpack.c.b16 %v2126, %v2125
    %v2130 = vsel %vm1569, %v2127, 0
    %v2133 = vsel %vm1569, %v2128, 0
    %2135 = vmatprep.subr.bf16.mxu0 0
    %2136 = vmatpush1.bf16.msra.mxu0 %v1538
    %2137 = vmatprep.subr.bf16.mxu0 0
    %2138 = vmatpush1.bf16.msra.mxu0 %v1547
    %2139 = vmatprep.subr.bf16.mxu0 0
    %2140 = vmatpush1.bf16.msra.mxu0 0
    %2141 = vmatprep.subr.bf16.mxu0 0
    %2142 = vmatpush1.bf16.msra.mxu0 0
    %2143 = vmatprep.subr.bf16.mxu0 0
    %2144 = vmatpush1.bf16.msra.mxu0 0
    %2145 = vmatprep.subr.bf16.mxu0 0
    %2146 = vmatpush1.bf16.msra.mxu0 0
    %2147 = vmatprep.subr.bf16.mxu0 0
    %2148 = vmatpush1.bf16.msra.mxu0 0
    %2149 = vmatprep.subr.bf16.mxu0 0
    %2150 = vmatpush1.bf16.msra.mxu0 0
    %2151 = vmatprep.subr.bf16.mxu0 0
    %2152 = vmatpush1.bf16.msra.mxu0 0
    %2153 = vmatprep.subr.bf16.mxu0 0
    %2154 = vmatpush1.bf16.msra.mxu0 0
    %2155 = vmatprep.subr.bf16.mxu0 0
    %2156 = vmatpush1.bf16.msra.mxu0 0
    %2157 = vmatprep.subr.bf16.mxu0 0
    %2158 = vmatpush1.bf16.msra.mxu0 0
    %2159 = vmatprep.subr.bf16.mxu0 0
    %2160 = vmatpush1.bf16.msra.mxu0 0
    %2161 = vmatprep.subr.bf16.mxu0 0
    %2162 = vmatpush1.bf16.msra.mxu0 0
    %2163 = vmatprep.subr.bf16.mxu0 0
    %2164 = vmatpush1.bf16.msra.mxu0 0
    %2165 = vmatprep.subr.bf16.mxu0 0
    %2166 = vmatpush1.bf16.msra.mxu0 0
    %2167 = vmatprep.mubr.bf16.mxu0 0
    %2168 = vmatmul.mubr.bf16.gmra.mrb[0].mxu0 %v2130
    %v2169 = vpop.f32.mrb[0].mxu0
    %v2170 = vadd.f32 %v1836, %v2169
    %v2171 = vpop.f32.mrb[0].mxu0
    %v2172 = vpop.f32.mrb[0].mxu0
    %v2173 = vadd.f32 %v1839, %v2172
    %v2174 = vpop.f32.mrb[0].mxu0
    %2175 = vmatprep.mubr.bf16.mxu0 0
    %2176 = vmatmul.mubr.bf16.gmra.mrb[0].mxu0 %v2133
    %v2177 = vpop.f32.mrb[0].mxu0
    %v2178 = vadd.f32 %v1844, %v2177
    %v2179 = vpop.f32.mrb[0].mxu0
    %v2180 = vpop.f32.mrb[0].mxu0
    %v2181 = vadd.f32 %v1847, %v2180
    %v2182 = vpop.f32.mrb[0].mxu0
    %2183 = vdwg.mxu0
    %v2184 = vadd.f32 %v2170, %v1906
    %v2185 = vadd.f32 %v2173, %v1909
    %v2186 = vadd.f32 %v2178, %v1914
    %v2187 = vadd.f32 %v2181, %v1917
    %v2188 = vadd.f32 %v2105, %v2184
    %v2189 = vadd.f32 %v2108, %v2185
    %v2190 = vadd.f32 %v2113, %v2186
    %v2191 = vadd.f32 %v2116, %v2187
    %v2192 = vadd.f32 %v2050, %v2188
    %v2193 = vadd.f32 %v2051, %v2189
    %v2194 = vadd.f32 %v2052, %v2190
    %v2195 = vadd.f32 %v2053, %v2191
    %v2196 = vld [vmem:[%s5] sm:$0x1]
    %v2198 = vlaneseq
    %v2199 = vshrl.u32 %v2198, 7
    %v2200 = vsub.s32 0, %v2199
    %v2201 = vrot.slane %v2196, %v2200
    %v2203 = vadd.f32 %v2192, %v2201
    %v2204 = vadd.f32 %v2193, %v2201
    %v2205 = vadd.f32 %v2194, %v2201
    %v2206 = vadd.f32 %v2195, %v2201
    %v2207 = vmax.f32 %v2203, 0.0
    %v2208 = vmax.f32 %v2204, 0.0
    %v2209 = vmax.f32 %v2205, 0.0
    %v2210 = vmax.f32 %v2206, 0.0
    %v2211 = vpack.c.bf16 %v2208, %v2207
    %v2212 = vpack.c.bf16 %v2210, %v2209
    %v2213 = vld [vmem:[#allocation11] sm:$0xf]
    %v2214 = vld [vmem:[#allocation11 + $0x4] sm:$0xf]
    %v2215 = vld [vmem:[#allocation11 + $0x8] sm:$0xf]
    %v2216 = vld [vmem:[#allocation11 + $0xc] sm:$0xf]
    %v2217 = vld [vmem:[#allocation11 + $0x10] sm:$0xf]
    %v2218 = vld [vmem:[#allocation11 + $0x14] sm:$0xf]
    %v2219 = vld [vmem:[#allocation11 + $0x18] sm:$0xf]
    %v2220 = vld [vmem:[#allocation11 + $0x1c] sm:$0xf]
    %v2221 = vld [vmem:[#allocation11 + $0x20] sm:$0xf]
    %v2222 = vld [vmem:[#allocation11 + $0x24] sm:$0xf]
    %v2223 = vld [vmem:[#allocation11 + $0x28] sm:$0xf]
    %v2224 = vld [vmem:[#allocation11 + $0x2c] sm:$0xf]
    %v2225 = vld [vmem:[#allocation11 + $0x30] sm:$0xf]
    %v2226 = vld [vmem:[#allocation11 + $0x34] sm:$0xf]
    %v2227 = vld [vmem:[#allocation11 + $0x38] sm:$0xf]
    %v2228 = vld [vmem:[#allocation11 + $0x3c] sm:$0xf]
    %v2229 = vld [vmem:[%s8] sm:$0x1]
    %v2231 = vlaneseq
    %v2232 = vshrl.u32 %v2231, 7
    %v2233 = vsub.s32 0, %v2232
    %v2234 = vrot.slane %v2229, %v2233
    %v2252 = vunpack.c.l.b16 %v2213
    %v2253 = vunpack.c.l.b16 %v2214
    %v2254 = vunpack.c.l.b16 %v2215
    %v2255 = vunpack.c.l.b16 %v2216
    %v2256 = vunpack.c.l.b16 %v2217
    %v2257 = vunpack.c.l.b16 %v2218
    %v2258 = vunpack.c.l.b16 %v2219
    %v2259 = vunpack.c.l.b16 %v2220
    %v2260 = vunpack.c.l.b16 %v2221
    %v2261 = vunpack.c.l.b16 %v2222
    %v2262 = vunpack.c.l.b16 %v2223
    %v2263 = vunpack.c.l.b16 %v2224
    %v2264 = vunpack.c.l.b16 %v2225
    %v2265 = vunpack.c.l.b16 %v2226
    %v2266 = vunpack.c.l.b16 %v2227
    %v2267 = vunpack.c.l.b16 %v2228
    %v2268 = vpack.c.b16 %v2253, %v2252
    %v2269 = vpack.c.b16 %v2255, %v2254
    %v2270 = vpack.c.b16 %v2257, %v2256
    %v2271 = vpack.c.b16 %v2259, %v2258
    %v2272 = vpack.c.b16 %v2261, %v2260
    %v2273 = vpack.c.b16 %v2263, %v2262
    %v2274 = vpack.c.b16 %v2265, %v2264
    %v2275 = vpack.c.b16 %v2267, %v2266
    %2284 = vmatprep.subr.bf16.mxu0 0
    %2285 = vmatpush1.bf16.msra.mxu0 %v2268
    %2286 = vmatprep.subr.bf16.mxu0 0
    %2287 = vmatpush1.bf16.msra.mxu0 %v2269
    %2288 = vmatprep.subr.bf16.mxu0 0
    %2289 = vmatpush1.bf16.msra.mxu0 %v2270
    %2290 = vmatprep.subr.bf16.mxu0 0
    %2291 = vmatpush1.bf16.msra.mxu0 %v2271
    %2292 = vmatprep.subr.bf16.mxu0 0
    %2293 = vmatpush1.bf16.msra.mxu0 %v2272
    %2294 = vmatprep.subr.bf16.mxu0 0
    %2295 = vmatpush1.bf16.msra.mxu0 %v2273
    %2296 = vmatprep.subr.bf16.mxu0 0
    %2297 = vmatpush1.bf16.msra.mxu0 %v2274
    %2298 = vmatprep.subr.bf16.mxu0 0
    %2299 = vmatpush1.bf16.msra.mxu0 %v2275
    %2300 = vmatprep.subr.bf16.mxu0 0
    %2301 = vmatpush1.bf16.msra.mxu0 0
    %2302 = vmatprep.subr.bf16.mxu0 0
    %2303 = vmatpush1.bf16.msra.mxu0 0
    %2304 = vmatprep.subr.bf16.mxu0 0
    %2305 = vmatpush1.bf16.msra.mxu0 0
    %2306 = vmatprep.subr.bf16.mxu0 0
    %2307 = vmatpush1.bf16.msra.mxu0 0
    %2308 = vmatprep.subr.bf16.mxu0 0
    %2309 = vmatpush1.bf16.msra.mxu0 0
    %2310 = vmatprep.subr.bf16.mxu0 0
    %2311 = vmatpush1.bf16.msra.mxu0 0
    %2312 = vmatprep.subr.bf16.mxu0 0
    %2313 = vmatpush1.bf16.msra.mxu0 0
    %2314 = vmatprep.subr.bf16.mxu0 0
    %2315 = vmatpush1.bf16.msra.mxu0 0
    %2316 = vmatprep.mubr.bf16.mxu0 0
    %2317 = vmatmul.mubr.bf16.gmra.mrb[0].mxu0 %v2211
    %v2318 = vpop.f32.mrb[0].mxu0
    %v2319 = vadd.f32 %v2234, %v2318
    %v2320 = vpop.f32.mrb[0].mxu0
    %v2321 = vpop.f32.mrb[0].mxu0
    %v2322 = vadd.f32 %v2234, %v2321
    %v2323 = vpop.f32.mrb[0].mxu0
    %2324 = vmatprep.mubr.bf16.mxu0 0
    %2325 = vmatmul.mubr.bf16.gmra.mrb[0].mxu0 %v2212
    %v2326 = vpop.f32.mrb[0].mxu0
    %v2327 = vadd.f32 %v2234, %v2326
    %v2328 = vpop.f32.mrb[0].mxu0
    %v2329 = vpop.f32.mrb[0].mxu0
    %v2330 = vadd.f32 %v2234, %v2329
    %v2331 = vpop.f32.mrb[0].mxu0
    %2332 = vdwg.mxu0
    %2333 = vst [vmem:[#allocation13] sm:$0xff] %v2319
    %2334 = vst [vmem:[#allocation13 + $0x8] sm:$0xff] %v2322
    %2335 = vst [vmem:[#allocation13 + $0x10] sm:$0xff] %v2327
    %2336 = vst [vmem:[#allocation13 + $0x18] sm:$0xff] %v2330
    // Predicated region
    $region62: #{tpu_custom_call.1} parent=1 // pred_check
      _
    $region63: #{tpu_custom_call.1} parent=1 // pred_check_branch
      %2338 = sbr.rel (0) target = $region65
    $region64: #{tpu_custom_call.1} parent=1 // pred_region
      %s2340 = ssub.s32 512, 512
      %2341 = vsyncadd [#allocation4], %s2340
      %s2342 = sshll.u32 [#allocation13], 4
      %s2343 = int_to_ptr.vmem [resolvable:$true] %s2342
      %2348 = dma.vmem_to_hbm [thread:$0]  %s2343, 512, %s9, [#allocation4], 128, 128, 8
    $region65: #{tpu_custom_call.1} parent=1 // pred_fallthru
      _
    // Predicated region
    $region66: #{tpu_custom_call.1} parent=1 // pred_check
      _
    $region67: #{tpu_custom_call.1} parent=1 // pred_check_branch
      %2350 = sbr.rel (0) target = $region69
    $region68: #{tpu_custom_call.1} parent=1 // pred_region
      %2351 = dma.done [#allocation4], 512
    $region69: #{tpu_custom_call.1} parent=1 // pred_fallthru
      _
    %2352 = vsyncpa [#allocation3], 1
    %2353 = vsyncpa [#allocation6], 1
    %2354 = vsyncpa [#allocation9], 1
    %2355 = vsyncpa [#allocation12], 1
    %2356 = vsyncpa [#allocation4], 1

</llo_original>
